<compile_context>
chip_gen: v6e
topology: v6e:2x2x1
jax: 0.10.0
libtpu: 0.0.40
codegen_flags: <defaults>
</compile_context>

<pallas_src>
import functools
import math

import jax
import jax.numpy as jnp
from jax import lax
from jax.experimental import pallas as pl
from jax.experimental.pallas import tpu as pltpu


LN_EPS = 1e-5
F32 = jnp.float32
BF16 = jnp.bfloat16


# ---------- numeric helpers shared by the kernel AND the reference ----------
def _bdot(a, b):
    """bf16-operand matmul with f32 accumulation (single MXU pass)."""
    return jnp.dot(a.astype(BF16), b.astype(BF16), preferred_element_type=F32)


def _bdot_nt(a, b):
    """a @ b.T with bf16 operands / f32 accumulation, contracting the last
    axis of both (no explicit transpose -> no XLU relayout in the kernel)."""
    return lax.dot_general(a.astype(BF16), b.astype(BF16),
                           dimension_numbers=(((1,), (1,)), ((), ())),
                           preferred_element_type=F32)


def _relu(t):
    return jnp.maximum(t, 0.0)


def _softmax_rows(s):
    s = s - jnp.max(s, axis=-1, keepdims=True)
    p = jnp.exp(s)
    return p / jnp.sum(p, axis=-1, keepdims=True)


def _layernorm(y, g, b):
    mu = jnp.mean(y, axis=-1, keepdims=True)
    var = jnp.mean((y - mu) ** 2, axis=-1, keepdims=True)
    return (y - mu) * lax.rsqrt(var + LN_EPS) * g + b


# ------------------------------- bias packing -------------------------------
def _pack_biases(vecs):
    """Pack 1-D f32 vectors into one (1, K) array.

    Each segment starts on a 128-lane boundary so in-kernel static slices pick
    whole lane-tiles (no cross-lane rotate).  Returns (packed, offsets).
    """
    chunks, offsets, off = [], [], 0
    for v in vecs:
        v = jnp.asarray(v, F32).reshape(-1)
        pad = (-v.shape[0]) % 128
        chunks.append(jnp.pad(v, (0, pad)))
        offsets.append(off)
        off += v.shape[0] + pad
    return jnp.concatenate(chunks)[None, :], tuple(offsets)


# ---------------------------------- kernel ----------------------------------
def _net4bdgp_kernel(
    x1_ref, x2_ref,
    w1a_ref, w1b_ref, w1c_ref, w2a_ref, w2b_ref,
    wqkv_ref, wo_ref, wff1_ref, wff2_ref, wc_ref,
    bias_ref,
    out_ref,
    *, nz, bspec,
):
    def bias(i):
        off, w = bspec[i]          # static lane-aligned offsets
        return bias_ref[0:1, off:off + w]

    b1b, bcat, bqkv, bo = bias(0), bias(1), bias(2), bias(3)
    ln1g, ln1b = bias(4), bias(5)
    bff1, bff2 = bias(6), bias(7)
    ln2g, ln2b, bc = bias(8), bias(9), bias(10)

    # encoder1: Linear(A,500,no bias)-ReLU-Linear(500,300)-ReLU   (dropout=id)
    h1 = _relu(_bdot(x1_ref[...], w1a_ref[...]))                  # (B, 500)
    h1 = _relu(_bdot(h1, w1b_ref[...]) + b1b)                     # (B, 300)

    # encoder2 first layer: Linear(B,300,no bias)-ReLU
    h2 = _relu(_bdot(x2_ref[...], w2a_ref[...]))                  # (B, 300)

    # Final encoder layers + feature concat, fused:
    #   x[:, :nz/2] = relu(h1 @ w1c + b1c),  x[:, nz/2:] = relu(h2 @ w2b + b2b)
    # via zero-padded (300, nz) weights -> no lane concat (the padded columns
    # contribute exact f32 zeros, so this is bit-identical to the concat).
    x = _relu(_bdot(h1, w1c_ref[...]) + _bdot(h2, w2b_ref[...]) + bcat)

    # ---- single-head self-attention across the B (= seq) axis ----
    qkv = _bdot(x, wqkv_ref[...]) + bqkv                          # (B, 3*nz)
    q = qkv[:, 0:nz]
    k = qkv[:, nz:2 * nz]
    v = qkv[:, 2 * nz:3 * nz]
    scores = _bdot_nt(q, k) * (1.0 / math.sqrt(nz))               # (B, B)
    p = _softmax_rows(scores)
    attn = _bdot(_bdot(p, v), wo_ref[...]) + bo                   # (B, nz)

    # residual + LayerNorm 1 (f32)
    y = _layernorm(x + attn, ln1g, ln1b)

    # feed-forward: Linear(nz,256)-ReLU-Linear(256,nz)
    ff = _relu(_bdot(y, wff1_ref[...]) + bff1)
    ff = _bdot(ff, wff2_ref[...]) + bff2

    # residual + LayerNorm 2 (f32)
    z = _layernorm(y + ff, ln2g, ln2b)

    # classifier: Linear(nz,5) + Sigmoid  (seq-mean is identity, seq dim == 1)
    out_ref[...] = jax.nn.sigmoid(_bdot(z, wc_ref[...]) + bc)


# --------------------------------- wrapper ----------------------------------
def net4bdgp_forward(x1, x2, params):
    """Single grid-less pallas_call; everything VMEM-resident (<<1 MiB)."""
    nz = params["wq"].shape[0]
    half = nz // 2
    batch = x1.shape[0]

    # Fold the feature-dim concat into zero-padded output weights.
    w1c_pad = jnp.zeros((300, nz), F32).at[:, :half].set(params["w1c"])
    w2b_pad = jnp.zeros((300, nz), F32).at[:, half:].set(params["w2b"])
    # Fuse q/k/v projection weights.
    wqkv = jnp.concatenate([params["wq"], params["wk"], params["wv"]], axis=1)

    bias_list = [
        params["b1b"],
        jnp.concatenate([params["b1c"], params["b2b"]]),
        jnp.concatenate([params["bq"], params["bk"], params["bv"]]),
        params["bo"], params["ln1g"], params["ln1b"],
        params["bff1"], params["bff2"], params["ln2g"], params["ln2b"],
        params["bc"],
    ]
    bias_vec, offs = _pack_biases(bias_list)
    widths = tuple(int(b.shape[0]) for b in bias_list)
    bspec = tuple(zip(offs, widths))

    # bf16 weights for the MXU (f32 accumulation inside the kernel).
    weights = [w.astype(BF16) for w in (
        params["w1a"], params["w1b"], w1c_pad, params["w2a"], w2b_pad,
        wqkv, params["wo"], params["wff1"], params["wff2"], params["wc"])]

    inputs = (x1, x2, *weights, bias_vec)
    vmem = pl.BlockSpec(memory_space=pltpu.MemorySpace.VMEM)
    kernel = functools.partial(_net4bdgp_kernel, nz=nz, bspec=bspec)
    return pl.pallas_call(
        kernel,
        out_shape=jax.ShapeDtypeStruct((batch, 5), F32),
        in_specs=[vmem] * len(inputs),
        out_specs=vmem,
    )(*inputs)


# ------------------------------ synthetic params ----------------------------
def make_params(key, input_A, input_B, nz):
    """Deterministic synthetic parameters (xavier-ish weights; small random
    biases / LN params so the packed-bias path is actually exercised)."""
    dff = 256
    half = nz // 2
    shapes_w = {
        "w1a": (input_A, 500), "w1b": (500, 300), "w1c": (300, half),
        "w2a": (input_B, 300), "w2b": (300, half),
        "wq": (nz, nz), "wk": (nz, nz), "wv": (nz, nz), "wo": (nz, nz),
        "wff1": (nz, dff), "wff2": (dff, nz), "wc": (nz, 5),
    }
    keys = jax.random.split(key, len(shapes_w) + 1)
    params = {}
    for (name, shp), k in zip(shapes_w.items(), keys[:-1]):
        fan_in, fan_out = shp
        std = (2.0 / (fan_in + fan_out)) ** 0.5 * (2.0 ** 0.5)  # xavier, gain=sqrt(2)
        params[name] = (jax.random.normal(k, shp, F32) * std).astype(F32)

    bkeys = jax.random.split(keys[-1], 14)
    noise = lambda k, n: 0.05 * jax.random.normal(k, (n,), F32)
    params.update(
        b1b=noise(bkeys[0], 300), b1c=noise(bkeys[1], half), b2b=noise(bkeys[2], half),
        bq=noise(bkeys[3], nz), bk=noise(bkeys[4], nz), bv=noise(bkeys[5], nz),
        bo=noise(bkeys[6], nz),
        ln1g=1.0 + noise(bkeys[7], nz), ln1b=noise(bkeys[8], nz),
        bff1=noise(bkeys[9], dff), bff2=noise(bkeys[10], nz),
        ln2g=1.0 + noise(bkeys[11], nz), ln2b=noise(bkeys[12], nz),
        bc=noise(bkeys[13], 5),
    )
    return params


# ------------------------------ pure-JAX reference ---------------------------
def reference_forward(x1, x2, p):
    """Pure-JAX reference mirroring the PyTorch forward (eval mode) using the
    same numeric helpers (bf16 operands / f32 accumulation) as the kernel."""
    nz = p["wq"].shape[0]

    h1 = _relu(_bdot(x1, p["w1a"]))
    h1 = _relu(_bdot(h1, p["w1b"]) + p["b1b"])
    h1 = _relu(_bdot(h1, p["w1c"]) + p["b1c"])
    h2 = _relu(_bdot(x2, p["w2a"]))
    h2 = _relu(_bdot(h2, p["w2b"]) + p["b2b"])
    x = jnp.concatenate([h1, h2], axis=-1)

    q = _bdot(x, p["wq"]) + p["bq"]
    k = _bdot(x, p["wk"]) + p["bk"]
    v = _bdot(x, p["wv"]) + p["bv"]
    s = _bdot_nt(q, k) * (1.0 / math.sqrt(nz))
    a = _softmax_rows(s)
    attn = _bdot(_bdot(a, v), p["wo"]) + p["bo"]
    y = _layernorm(x + attn, p["ln1g"], p["ln1b"])
    ff = _bdot(_relu(_bdot(y, p["wff1"]) + p["bff1"]), p["wff2"]) + p["bff2"]
    z = _layernorm(y + ff, p["ln2g"], p["ln2b"])
    return jax.nn.sigmoid(_bdot(z, p["wc"]) + p["bc"])


if __name__ == "__main__":
    input_A, input_B, nz, batch = 16, 16, 32, 8

    key = jax.random.PRNGKey(0)
    kx1, kx2, kp = jax.random.split(key, 3)
    x1 = jax.random.normal(kx1, (batch, input_A), F32)
    x2 = jax.random.normal(kx2, (batch, input_B), F32)
    params = make_params(kp, input_A, input_B, nz)

    out = net4bdgp_forward(x1, x2, params)
    out = jax.block_until_ready(out)

    ref = reference_forward(x1, x2, params)
    assert out.shape == (batch, 5)
    # Tolerance accounts for single-pass bf16 matmuls plus small differences
    # between Mosaic and XLA transcendental implementations (exp/rsqrt/sigmoid).
    assert jnp.allclose(out, ref, atol=1e-2, rtol=1e-2), (
        "mismatch vs pure-JAX reference: max abs diff "
        f"{float(jnp.max(jnp.abs(out - ref)))}")

    print("KERNEL_OK")
</pallas_src>

<mosaic_0001>
module attributes {stable_mosaic.version = 11 : i64} {
  func.func @_net4bdgp_kernel(%arg0: memref<8x16xf32, #tpu.memory_space<vmem>>, %arg1: memref<8x16xf32, #tpu.memory_space<vmem>>, %arg2: memref<16x500xbf16, #tpu.memory_space<vmem>>, %arg3: memref<500x300xbf16, #tpu.memory_space<vmem>>, %arg4: memref<300x32xbf16, #tpu.memory_space<vmem>>, %arg5: memref<16x300xbf16, #tpu.memory_space<vmem>>, %arg6: memref<300x32xbf16, #tpu.memory_space<vmem>>, %arg7: memref<32x96xbf16, #tpu.memory_space<vmem>>, %arg8: memref<32x32xbf16, #tpu.memory_space<vmem>>, %arg9: memref<32x256xbf16, #tpu.memory_space<vmem>>, %arg10: memref<256x32xbf16, #tpu.memory_space<vmem>>, %arg11: memref<32x5xbf16, #tpu.memory_space<vmem>>, %arg12: memref<1x1792xf32, #tpu.memory_space<vmem>>, %arg13: memref<8x5xf32, #tpu.memory_space<vmem>>) attributes {dimension_semantics = [], scalar_prefetch = 0 : i64, scratch_operands = 0 : i64, tpu.core_type = #tpu.core_type<tc>} {
    %c0 = arith.constant 0 : index
    %c0_0 = arith.constant 0 : index
    %0 = vector.load %arg12[%c0, %c0_0] : memref<1x1792xf32, #tpu.memory_space<vmem>>, vector<1x300xf32>
    %c0_1 = arith.constant 0 : index
    %c384 = arith.constant 384 : index
    %1 = vector.load %arg12[%c0_1, %c384] : memref<1x1792xf32, #tpu.memory_space<vmem>>, vector<1x32xf32>
    %c0_2 = arith.constant 0 : index
    %c512 = arith.constant 512 : index
    %2 = vector.load %arg12[%c0_2, %c512] : memref<1x1792xf32, #tpu.memory_space<vmem>>, vector<1x96xf32>
    %c0_3 = arith.constant 0 : index
    %c640 = arith.constant 640 : index
    %3 = vector.load %arg12[%c0_3, %c640] : memref<1x1792xf32, #tpu.memory_space<vmem>>, vector<1x32xf32>
    %c0_4 = arith.constant 0 : index
    %c768 = arith.constant 768 : index
    %4 = vector.load %arg12[%c0_4, %c768] : memref<1x1792xf32, #tpu.memory_space<vmem>>, vector<1x32xf32>
    %c0_5 = arith.constant 0 : index
    %c896 = arith.constant 896 : index
    %5 = vector.load %arg12[%c0_5, %c896] : memref<1x1792xf32, #tpu.memory_space<vmem>>, vector<1x32xf32>
    %c0_6 = arith.constant 0 : index
    %c1024 = arith.constant 1024 : index
    %6 = vector.load %arg12[%c0_6, %c1024] : memref<1x1792xf32, #tpu.memory_space<vmem>>, vector<1x256xf32>
    %c0_7 = arith.constant 0 : index
    %c1280 = arith.constant 1280 : index
    %7 = vector.load %arg12[%c0_7, %c1280] : memref<1x1792xf32, #tpu.memory_space<vmem>>, vector<1x32xf32>
    %c0_8 = arith.constant 0 : index
    %c1408 = arith.constant 1408 : index
    %8 = vector.load %arg12[%c0_8, %c1408] : memref<1x1792xf32, #tpu.memory_space<vmem>>, vector<1x32xf32>
    %c0_9 = arith.constant 0 : index
    %c1536 = arith.constant 1536 : index
    %9 = vector.load %arg12[%c0_9, %c1536] : memref<1x1792xf32, #tpu.memory_space<vmem>>, vector<1x32xf32>
    %c0_10 = arith.constant 0 : index
    %c1664 = arith.constant 1664 : index
    %10 = vector.load %arg12[%c0_10, %c1664] : memref<1x1792xf32, #tpu.memory_space<vmem>>, vector<1x5xf32>
    %c0_11 = arith.constant 0 : index
    %c0_12 = arith.constant 0 : index
    %11 = vector.load %arg0[%c0_11, %c0_12] : memref<8x16xf32, #tpu.memory_space<vmem>>, vector<8x16xf32>
    %c0_13 = arith.constant 0 : index
    %c0_14 = arith.constant 0 : index
    %12 = vector.load %arg2[%c0_13, %c0_14] : memref<16x500xbf16, #tpu.memory_space<vmem>>, vector<16x500xbf16>
    %13 = arith.truncf %11 : vector<8x16xf32> to vector<8x16xbf16>
    %cst = arith.constant dense<0.000000e+00> : vector<8x500xf32>
    %14 = tpu.matmul %13, %12, %cst {dimension_numbers = #tpu.dot_dimension_numbers<[1], [0], [0], [1], [0, 0, 1, 1], [], []>} : vector<8x16xbf16>, vector<16x500xbf16>, vector<8x500xf32> -> vector<8x500xf32>
    %cst_15 = arith.constant 0.000000e+00 : f32
    %15 = vector.broadcast %cst_15 : f32 to vector<8x500xf32>
    %16 = arith.maximumf %14, %15 : vector<8x500xf32>
    %c0_16 = arith.constant 0 : index
    %c0_17 = arith.constant 0 : index
    %17 = vector.load %arg3[%c0_16, %c0_17] : memref<500x300xbf16, #tpu.memory_space<vmem>>, vector<500x300xbf16>
    %18 = arith.truncf %16 : vector<8x500xf32> to vector<8x500xbf16>
    %cst_18 = arith.constant dense<0.000000e+00> : vector<8x300xf32>
    %19 = tpu.matmul %18, %17, %cst_18 {dimension_numbers = #tpu.dot_dimension_numbers<[1], [0], [0], [1], [0, 0, 1, 1], [], []>} : vector<8x500xbf16>, vector<500x300xbf16>, vector<8x300xf32> -> vector<8x300xf32>
    %20 = vector.broadcast %0 : vector<1x300xf32> to vector<8x300xf32>
    %21 = arith.addf %19, %20 : vector<8x300xf32>
    %cst_19 = arith.constant 0.000000e+00 : f32
    %22 = vector.broadcast %cst_19 : f32 to vector<8x300xf32>
    %23 = arith.maximumf %21, %22 : vector<8x300xf32>
    %c0_20 = arith.constant 0 : index
    %c0_21 = arith.constant 0 : index
    %24 = vector.load %arg1[%c0_20, %c0_21] : memref<8x16xf32, #tpu.memory_space<vmem>>, vector<8x16xf32>
    %c0_22 = arith.constant 0 : index
    %c0_23 = arith.constant 0 : index
    %25 = vector.load %arg5[%c0_22, %c0_23] : memref<16x300xbf16, #tpu.memory_space<vmem>>, vector<16x300xbf16>
    %26 = arith.truncf %24 : vector<8x16xf32> to vector<8x16xbf16>
    %cst_24 = arith.constant dense<0.000000e+00> : vector<8x300xf32>
    %27 = tpu.matmul %26, %25, %cst_24 {dimension_numbers = #tpu.dot_dimension_numbers<[1], [0], [0], [1], [0, 0, 1, 1], [], []>} : vector<8x16xbf16>, vector<16x300xbf16>, vector<8x300xf32> -> vector<8x300xf32>
    %cst_25 = arith.constant 0.000000e+00 : f32
    %28 = vector.broadcast %cst_25 : f32 to vector<8x300xf32>
    %29 = arith.maximumf %27, %28 : vector<8x300xf32>
    %c0_26 = arith.constant 0 : index
    %c0_27 = arith.constant 0 : index
    %30 = vector.load %arg4[%c0_26, %c0_27] : memref<300x32xbf16, #tpu.memory_space<vmem>>, vector<300x32xbf16>
    %31 = arith.truncf %23 : vector<8x300xf32> to vector<8x300xbf16>
    %cst_28 = arith.constant dense<0.000000e+00> : vector<8x32xf32>
    %32 = tpu.matmul %31, %30, %cst_28 {dimension_numbers = #tpu.dot_dimension_numbers<[1], [0], [0], [1], [0, 0, 1, 1], [], []>} : vector<8x300xbf16>, vector<300x32xbf16>, vector<8x32xf32> -> vector<8x32xf32>
    %c0_29 = arith.constant 0 : index
    %c0_30 = arith.constant 0 : index
    %33 = vector.load %arg6[%c0_29, %c0_30] : memref<300x32xbf16, #tpu.memory_space<vmem>>, vector<300x32xbf16>
    %34 = arith.truncf %29 : vector<8x300xf32> to vector<8x300xbf16>
    %cst_31 = arith.constant dense<0.000000e+00> : vector<8x32xf32>
    %35 = tpu.matmul %34, %33, %cst_31 {dimension_numbers = #tpu.dot_dimension_numbers<[1], [0], [0], [1], [0, 0, 1, 1], [], []>} : vector<8x300xbf16>, vector<300x32xbf16>, vector<8x32xf32> -> vector<8x32xf32>
    %36 = arith.addf %32, %35 : vector<8x32xf32>
    %37 = vector.broadcast %1 : vector<1x32xf32> to vector<8x32xf32>
    %38 = arith.addf %36, %37 : vector<8x32xf32>
    %cst_32 = arith.constant 0.000000e+00 : f32
    %39 = vector.broadcast %cst_32 : f32 to vector<8x32xf32>
    %40 = arith.maximumf %38, %39 : vector<8x32xf32>
    %c0_33 = arith.constant 0 : index
    %c0_34 = arith.constant 0 : index
    %41 = vector.load %arg7[%c0_33, %c0_34] : memref<32x96xbf16, #tpu.memory_space<vmem>>, vector<32x96xbf16>
    %42 = arith.truncf %40 : vector<8x32xf32> to vector<8x32xbf16>
    %cst_35 = arith.constant dense<0.000000e+00> : vector<8x96xf32>
    %43 = tpu.matmul %42, %41, %cst_35 {dimension_numbers = #tpu.dot_dimension_numbers<[1], [0], [0], [1], [0, 0, 1, 1], [], []>} : vector<8x32xbf16>, vector<32x96xbf16>, vector<8x96xf32> -> vector<8x96xf32>
    %44 = vector.broadcast %2 : vector<1x96xf32> to vector<8x96xf32>
    %45 = arith.addf %43, %44 : vector<8x96xf32>
    %46 = vector.extract_strided_slice %45 {offsets = [0, 0], sizes = [8, 32], strides = [1, 1]} : vector<8x96xf32> to vector<8x32xf32>
    %47 = vector.extract_strided_slice %45 {offsets = [0, 32], sizes = [8, 32], strides = [1, 1]} : vector<8x96xf32> to vector<8x32xf32>
    %48 = vector.extract_strided_slice %45 {offsets = [0, 64], sizes = [8, 32], strides = [1, 1]} : vector<8x96xf32> to vector<8x32xf32>
    %49 = arith.truncf %46 : vector<8x32xf32> to vector<8x32xbf16>
    %50 = arith.truncf %47 : vector<8x32xf32> to vector<8x32xbf16>
    %cst_36 = arith.constant dense<0.000000e+00> : vector<8x8xf32>
    %51 = tpu.matmul %49, %50, %cst_36 {dimension_numbers = #tpu.dot_dimension_numbers<[1], [1], [0], [0], [0, 0, 1, 0], [], []>} : vector<8x32xbf16>, vector<8x32xbf16>, vector<8x8xf32> -> vector<8x8xf32>
    %cst_37 = arith.constant 0.176776692 : f32
    %52 = vector.broadcast %cst_37 : f32 to vector<8x8xf32>
    %53 = arith.mulf %51, %52 : vector<8x8xf32>
    %cst_38 = arith.constant dense<0xFF800000> : vector<8xf32>
    %54 = vector.multi_reduction <maximumf>, %53, %cst_38 [1] : vector<8x8xf32> to vector<8xf32>
    %55 = vector.shape_cast %54 : vector<8xf32> to vector<8x1xf32>
    %56 = vector.broadcast %55 : vector<8x1xf32> to vector<8x8xf32>
    %57 = arith.subf %53, %56 : vector<8x8xf32>
    %58 = math.exp %57 : vector<8x8xf32>
    %cst_39 = arith.constant dense<0.000000e+00> : vector<8xf32>
    %59 = vector.multi_reduction <add>, %58, %cst_39 [1] : vector<8x8xf32> to vector<8xf32>
    %60 = vector.shape_cast %59 : vector<8xf32> to vector<8x1xf32>
    %61 = vector.broadcast %60 : vector<8x1xf32> to vector<8x8xf32>
    %62 = arith.divf %58, %61 : vector<8x8xf32>
    %63 = arith.truncf %62 : vector<8x8xf32> to vector<8x8xbf16>
    %64 = arith.truncf %48 : vector<8x32xf32> to vector<8x32xbf16>
    %cst_40 = arith.constant dense<0.000000e+00> : vector<8x32xf32>
    %65 = tpu.matmul %63, %64, %cst_40 {dimension_numbers = #tpu.dot_dimension_numbers<[1], [0], [0], [1], [0, 0, 1, 1], [], []>} : vector<8x8xbf16>, vector<8x32xbf16>, vector<8x32xf32> -> vector<8x32xf32>
    %c0_41 = arith.constant 0 : index
    %c0_42 = arith.constant 0 : index
    %66 = vector.load %arg8[%c0_41, %c0_42] : memref<32x32xbf16, #tpu.memory_space<vmem>>, vector<32x32xbf16>
    %67 = arith.truncf %65 : vector<8x32xf32> to vector<8x32xbf16>
    %cst_43 = arith.constant dense<0.000000e+00> : vector<8x32xf32>
    %68 = tpu.matmul %67, %66, %cst_43 {dimension_numbers = #tpu.dot_dimension_numbers<[1], [0], [0], [1], [0, 0, 1, 1], [], []>} : vector<8x32xbf16>, vector<32x32xbf16>, vector<8x32xf32> -> vector<8x32xf32>
    %69 = vector.broadcast %3 : vector<1x32xf32> to vector<8x32xf32>
    %70 = arith.addf %68, %69 : vector<8x32xf32>
    %71 = arith.addf %40, %70 : vector<8x32xf32>
    %cst_44 = arith.constant dense<0.000000e+00> : vector<8xf32>
    %72 = vector.multi_reduction <add>, %71, %cst_44 [1] : vector<8x32xf32> to vector<8xf32>
    %73 = vector.shape_cast %72 : vector<8xf32> to vector<8x1xf32>
    %cst_45 = arith.constant 3.200000e+01 : f32
    %74 = vector.broadcast %cst_45 : f32 to vector<8x1xf32>
    %75 = arith.divf %73, %74 : vector<8x1xf32>
    %76 = vector.broadcast %75 : vector<8x1xf32> to vector<8x32xf32>
    %77 = arith.subf %71, %76 : vector<8x32xf32>
    %78 = arith.mulf %77, %77 : vector<8x32xf32>
    %cst_46 = arith.constant dense<0.000000e+00> : vector<8xf32>
    %79 = vector.multi_reduction <add>, %78, %cst_46 [1] : vector<8x32xf32> to vector<8xf32>
    %80 = vector.shape_cast %79 : vector<8xf32> to vector<8x1xf32>
    %cst_47 = arith.constant 3.200000e+01 : f32
    %81 = vector.broadcast %cst_47 : f32 to vector<8x1xf32>
    %82 = arith.divf %80, %81 : vector<8x1xf32>
    %83 = vector.broadcast %75 : vector<8x1xf32> to vector<8x32xf32>
    %84 = arith.subf %71, %83 : vector<8x32xf32>
    %cst_48 = arith.constant 9.99999974E-6 : f32
    %85 = vector.broadcast %cst_48 : f32 to vector<8x1xf32>
    %86 = arith.addf %82, %85 : vector<8x1xf32>
    %87 = math.rsqrt %86 : vector<8x1xf32>
    %88 = vector.broadcast %87 : vector<8x1xf32> to vector<8x32xf32>
    %89 = arith.mulf %84, %88 : vector<8x32xf32>
    %90 = vector.broadcast %4 : vector<1x32xf32> to vector<8x32xf32>
    %91 = arith.mulf %89, %90 : vector<8x32xf32>
    %92 = vector.broadcast %5 : vector<1x32xf32> to vector<8x32xf32>
    %93 = arith.addf %91, %92 : vector<8x32xf32>
    %c0_49 = arith.constant 0 : index
    %c0_50 = arith.constant 0 : index
    %94 = vector.load %arg9[%c0_49, %c0_50] : memref<32x256xbf16, #tpu.memory_space<vmem>>, vector<32x256xbf16>
    %95 = arith.truncf %93 : vector<8x32xf32> to vector<8x32xbf16>
    %cst_51 = arith.constant dense<0.000000e+00> : vector<8x256xf32>
    %96 = tpu.matmul %95, %94, %cst_51 {dimension_numbers = #tpu.dot_dimension_numbers<[1], [0], [0], [1], [0, 0, 1, 1], [], []>} : vector<8x32xbf16>, vector<32x256xbf16>, vector<8x256xf32> -> vector<8x256xf32>
    %97 = vector.broadcast %6 : vector<1x256xf32> to vector<8x256xf32>
    %98 = arith.addf %96, %97 : vector<8x256xf32>
    %cst_52 = arith.constant 0.000000e+00 : f32
    %99 = vector.broadcast %cst_52 : f32 to vector<8x256xf32>
    %100 = arith.maximumf %98, %99 : vector<8x256xf32>
    %c0_53 = arith.constant 0 : index
    %c0_54 = arith.constant 0 : index
    %101 = vector.load %arg10[%c0_53, %c0_54] : memref<256x32xbf16, #tpu.memory_space<vmem>>, vector<256x32xbf16>
    %102 = arith.truncf %100 : vector<8x256xf32> to vector<8x256xbf16>
    %cst_55 = arith.constant dense<0.000000e+00> : vector<8x32xf32>
    %103 = tpu.matmul %102, %101, %cst_55 {dimension_numbers = #tpu.dot_dimension_numbers<[1], [0], [0], [1], [0, 0, 1, 1], [], []>} : vector<8x256xbf16>, vector<256x32xbf16>, vector<8x32xf32> -> vector<8x32xf32>
    %104 = vector.broadcast %7 : vector<1x32xf32> to vector<8x32xf32>
    %105 = arith.addf %103, %104 : vector<8x32xf32>
    %106 = arith.addf %93, %105 : vector<8x32xf32>
    %cst_56 = arith.constant dense<0.000000e+00> : vector<8xf32>
    %107 = vector.multi_reduction <add>, %106, %cst_56 [1] : vector<8x32xf32> to vector<8xf32>
    %108 = vector.shape_cast %107 : vector<8xf32> to vector<8x1xf32>
    %cst_57 = arith.constant 3.200000e+01 : f32
    %109 = vector.broadcast %cst_57 : f32 to vector<8x1xf32>
    %110 = arith.divf %108, %109 : vector<8x1xf32>
    %111 = vector.broadcast %110 : vector<8x1xf32> to vector<8x32xf32>
    %112 = arith.subf %106, %111 : vector<8x32xf32>
    %113 = arith.mulf %112, %112 : vector<8x32xf32>
    %cst_58 = arith.constant dense<0.000000e+00> : vector<8xf32>
    %114 = vector.multi_reduction <add>, %113, %cst_58 [1] : vector<8x32xf32> to vector<8xf32>
    %115 = vector.shape_cast %114 : vector<8xf32> to vector<8x1xf32>
    %cst_59 = arith.constant 3.200000e+01 : f32
    %116 = vector.broadcast %cst_59 : f32 to vector<8x1xf32>
    %117 = arith.divf %115, %116 : vector<8x1xf32>
    %118 = vector.broadcast %110 : vector<8x1xf32> to vector<8x32xf32>
    %119 = arith.subf %106, %118 : vector<8x32xf32>
    %cst_60 = arith.constant 9.99999974E-6 : f32
    %120 = vector.broadcast %cst_60 : f32 to vector<8x1xf32>
    %121 = arith.addf %117, %120 : vector<8x1xf32>
    %122 = math.rsqrt %121 : vector<8x1xf32>
    %123 = vector.broadcast %122 : vector<8x1xf32> to vector<8x32xf32>
    %124 = arith.mulf %119, %123 : vector<8x32xf32>
    %125 = vector.broadcast %8 : vector<1x32xf32> to vector<8x32xf32>
    %126 = arith.mulf %124, %125 : vector<8x32xf32>
    %127 = vector.broadcast %9 : vector<1x32xf32> to vector<8x32xf32>
    %128 = arith.addf %126, %127 : vector<8x32xf32>
    %c0_61 = arith.constant 0 : index
    %c0_62 = arith.constant 0 : index
    %129 = vector.load %arg11[%c0_61, %c0_62] : memref<32x5xbf16, #tpu.memory_space<vmem>>, vector<32x5xbf16>
    %130 = arith.truncf %128 : vector<8x32xf32> to vector<8x32xbf16>
    %cst_63 = arith.constant dense<0.000000e+00> : vector<8x5xf32>
    %131 = tpu.matmul %130, %129, %cst_63 {dimension_numbers = #tpu.dot_dimension_numbers<[1], [0], [0], [1], [0, 0, 1, 1], [], []>} : vector<8x32xbf16>, vector<32x5xbf16>, vector<8x5xf32> -> vector<8x5xf32>
    %132 = vector.broadcast %10 : vector<1x5xf32> to vector<8x5xf32>
    %133 = arith.addf %131, %132 : vector<8x5xf32>
    %134 = arith.negf %133 : vector<8x5xf32>
    %135 = math.exp %134 : vector<8x5xf32>
    %cst_64 = arith.constant 1.000000e+00 : f32
    %136 = vector.broadcast %cst_64 : f32 to vector<8x5xf32>
    %137 = arith.addf %136, %135 : vector<8x5xf32>
    %138 = arith.divf %136, %137 : vector<8x5xf32>
    %c0_65 = arith.constant 0 : index
    %c0_66 = arith.constant 0 : index
    %139 = vector.load %arg13[%c0_65, %c0_66] : memref<8x5xf32, #tpu.memory_space<vmem>>, vector<8x5xf32>
    tpu.vector_store %arg13[%c0_65, %c0_66], %138 {strides = array<i32>} : memref<8x5xf32, #tpu.memory_space<vmem>>, vector<8x5xf32>,
    return
  }
}

</mosaic_0001>

<llo_original>
// kernel: tpu_custom_call.1
$region0: #{tpu_custom_call.1}
  #allocation0 [shape = 'u32[]', space=smem, size = 0x4, offset = 0x4, fixed_abs, tag = 'smem constant byte address 0x4 - core index']
  #allocation1 [shape = 'u32[144,128]{1,0:T(1,128)}', space=vmem, size = 0x12000, scoped, tag = 'internal scratch']
  %s0 = inlined_call_operand.vmem [shape: f32[8,16], index: 0, kind: input, shape index: {}]
  %s1 = inlined_call_operand.vmem [shape: f32[8,16], index: 1, kind: input, shape index: {}]
  %s2 = inlined_call_operand.vmem [shape: bf16[16,500], index: 2, kind: input, shape index: {}]
  %s3 = inlined_call_operand.vmem [shape: bf16[500,300], index: 3, kind: input, shape index: {}]
  %s4 = inlined_call_operand.vmem [shape: bf16[300,32], index: 4, kind: input, shape index: {}]
  %s5 = inlined_call_operand.vmem [shape: bf16[16,300], index: 5, kind: input, shape index: {}]
  %s6 = inlined_call_operand.vmem [shape: bf16[300,32], index: 6, kind: input, shape index: {}]
  %s7 = inlined_call_operand.vmem [shape: bf16[32,96], index: 7, kind: input, shape index: {}]
  %s8 = inlined_call_operand.vmem [shape: bf16[32,32], index: 8, kind: input, shape index: {}]
  %s9 = inlined_call_operand.vmem [shape: bf16[32,256], index: 9, kind: input, shape index: {}]
  %s10 = inlined_call_operand.vmem [shape: bf16[256,32], index: 10, kind: input, shape index: {}]
  %s11 = inlined_call_operand.vmem [shape: bf16[32,5], index: 11, kind: input, shape index: {}]
  %s12 = inlined_call_operand.vmem [shape: f32[1,1792], index: 12, kind: input, shape index: {}]
  %s13 = inlined_call_operand.hbm [shape: f32[8,5], index: 13, kind: output, shape index: {}]
  %s14 = sld [smem:[#allocation0]]
  $region62: #{tpu_custom_call.1} parent=0
    _
  %s16 = ssub.s32 1, %s14
  %s17 = scalar_select 0, %s16, %s14
  $region1: #{tpu_custom_call.1} parent=0
    #allocation2 [shape = 'u8[4096]{0}', space=vmem, size = 0x1000, scoped, tag = 'output window, operand 0, single buffered']
    #allocation3 [shape = 's32[1]{0}', space=sflag, size = 0x4, scoped, tag = 'scoped memory for tpu_custom_call.1']
    %18 = vsyncpa [#allocation3], 0
    // Predicated region
    $region2: #{tpu_custom_call.1} parent=1 // pred_check
      _
    $region3: #{tpu_custom_call.1} parent=1 // pred_check_branch
      %20 = sbr.rel (0) target = $region5
    $region4: #{tpu_custom_call.1} parent=1 // pred_region
      _
    $region5: #{tpu_custom_call.1} parent=1 // pred_fallthru
      _
    // Predicated region
    $region6: #{tpu_custom_call.1} parent=1 // pred_check
      _
    $region7: #{tpu_custom_call.1} parent=1 // pred_check_branch
      %22 = sbr.rel (0) target = $region9
    $region8: #{tpu_custom_call.1} parent=1 // pred_region
      _
    $region9: #{tpu_custom_call.1} parent=1 // pred_fallthru
      _
    // Predicated region
    $region10: #{tpu_custom_call.1} parent=1 // pred_check
      _
    $region11: #{tpu_custom_call.1} parent=1 // pred_check_branch
      %24 = sbr.rel (0) target = $region13
    $region12: #{tpu_custom_call.1} parent=1 // pred_region
      _
    $region13: #{tpu_custom_call.1} parent=1 // pred_fallthru
      _
    // Predicated region
    $region14: #{tpu_custom_call.1} parent=1 // pred_check
      _
    $region15: #{tpu_custom_call.1} parent=1 // pred_check_branch
      %26 = sbr.rel (0) target = $region17
    $region16: #{tpu_custom_call.1} parent=1 // pred_region
      _
    $region17: #{tpu_custom_call.1} parent=1 // pred_fallthru
      _
    // Predicated region
    $region18: #{tpu_custom_call.1} parent=1 // pred_check
      _
    $region19: #{tpu_custom_call.1} parent=1 // pred_check_branch
      %28 = sbr.rel (0) target = $region21
    $region20: #{tpu_custom_call.1} parent=1 // pred_region
      _
    $region21: #{tpu_custom_call.1} parent=1 // pred_fallthru
      _
    // Predicated region
    $region22: #{tpu_custom_call.1} parent=1 // pred_check
      _
    $region23: #{tpu_custom_call.1} parent=1 // pred_check_branch
      %30 = sbr.rel (0) target = $region25
    $region24: #{tpu_custom_call.1} parent=1 // pred_region
      _
    $region25: #{tpu_custom_call.1} parent=1 // pred_fallthru
      _
    // Predicated region
    $region26: #{tpu_custom_call.1} parent=1 // pred_check
      _
    $region27: #{tpu_custom_call.1} parent=1 // pred_check_branch
      %32 = sbr.rel (0) target = $region29
    $region28: #{tpu_custom_call.1} parent=1 // pred_region
      _
    $region29: #{tpu_custom_call.1} parent=1 // pred_fallthru
      _
    // Predicated region
    $region30: #{tpu_custom_call.1} parent=1 // pred_check
      _
    $region31: #{tpu_custom_call.1} parent=1 // pred_check_branch
      %34 = sbr.rel (0) target = $region33
    $region32: #{tpu_custom_call.1} parent=1 // pred_region
      _
    $region33: #{tpu_custom_call.1} parent=1 // pred_fallthru
      _
    // Predicated region
    $region34: #{tpu_custom_call.1} parent=1 // pred_check
      _
    $region35: #{tpu_custom_call.1} parent=1 // pred_check_branch
      %36 = sbr.rel (0) target = $region37
    $region36: #{tpu_custom_call.1} parent=1 // pred_region
      _
    $region37: #{tpu_custom_call.1} parent=1 // pred_fallthru
      _
    // Predicated region
    $region38: #{tpu_custom_call.1} parent=1 // pred_check
      _
    $region39: #{tpu_custom_call.1} parent=1 // pred_check_branch
      %38 = sbr.rel (0) target = $region41
    $region40: #{tpu_custom_call.1} parent=1 // pred_region
      _
    $region41: #{tpu_custom_call.1} parent=1 // pred_fallthru
      _
    // Predicated region
    $region42: #{tpu_custom_call.1} parent=1 // pred_check
      _
    $region43: #{tpu_custom_call.1} parent=1 // pred_check_branch
      %40 = sbr.rel (0) target = $region45
    $region44: #{tpu_custom_call.1} parent=1 // pred_region
      _
    $region45: #{tpu_custom_call.1} parent=1 // pred_fallthru
      _
    // Predicated region
    $region46: #{tpu_custom_call.1} parent=1 // pred_check
      _
    $region47: #{tpu_custom_call.1} parent=1 // pred_check_branch
      %42 = sbr.rel (0) target = $region49
    $region48: #{tpu_custom_call.1} parent=1 // pred_region
      _
    $region49: #{tpu_custom_call.1} parent=1 // pred_fallthru
      _
    // Predicated region
    $region50: #{tpu_custom_call.1} parent=1 // pred_check
      _
    $region51: #{tpu_custom_call.1} parent=1 // pred_check_branch
      %44 = sbr.rel (0) target = $region53
    $region52: #{tpu_custom_call.1} parent=1 // pred_region
      _
    $region53: #{tpu_custom_call.1} parent=1 // pred_fallthru
      _
    %v46 = vld [vmem:[%s12] sm:$0x7]
    %v47 = vld [vmem:[%s12 + $0x3] sm:$0x1]
    %v48 = vld [vmem:[%s12 + $0x4] sm:$0x1]
    %v49 = vld [vmem:[%s12 + $0x5] sm:$0x1]
    %v50 = vld [vmem:[%s12 + $0x6] sm:$0x1]
    %v51 = vld [vmem:[%s12 + $0x7] sm:$0x1]
    %v52 = vld [vmem:[%s12 + $0x8] sm:$0x3]
    %v53 = vld [vmem:[%s12 + $0xa] sm:$0x1]
    %v54 = vld [vmem:[%s12 + $0xb] sm:$0x1]
    %v55 = vld [vmem:[%s12 + $0xc] sm:$0x1]
    %v56 = vld [vmem:[%s12 + $0xd] sm:$0x1]
    %v57 = vld [vmem:[%s0] sm:$0xff]
    %v58 = vld [vmem:[%s2] sm:$0xff]
    %v59 = vld [vmem:[%s2 + $0x8] sm:$0xff]
    %v60 = vld [vmem:[%s2 + $0x10] sm:$0xff]
    %v61 = vld [vmem:[%s2 + $0x18] sm:$0xff]
    %v62 = vpack.c.bf16 %v57, %v57
    %v67 = vunpack.c.l.b16 %v58
    %v68 = vunpack.c.h.b16 %v58
    %v69 = vunpack.c.l.b16 %v59
    %v70 = vunpack.c.h.b16 %v59
    %v71 = vunpack.c.l.b16 %v60
    %v72 = vunpack.c.h.b16 %v60
    %v73 = vunpack.c.l.b16 %v61
    %v74 = vunpack.c.h.b16 %v61
    %v75 = vpack.c.b16 %v71, %v67
    %v76 = vpack.c.b16 %v72, %v68
    %v77 = vpack.c.b16 %v73, %v69
    %v78 = vpack.c.b16 %v74, %v70
    %vm83 = vcmask 130048
    %v85 = vsel %vm83, %v62, 0
    %87 = vmatprep.subr.bf16.mxu0 0
    %88 = vmatpush1.bf16.msra.mxu0 0
    %89 = vmatprep.subr.bf16.mxu0 0
    %90 = vmatpush1.bf16.msra.mxu0 0
    %91 = vmatprep.subr.bf16.mxu0 0
    %92 = vmatpush1.bf16.msra.mxu0 0
    %93 = vmatprep.subr.bf16.mxu0 0
    %94 = vmatpush1.bf16.msra.mxu0 0
    %95 = vmatprep.subr.bf16.mxu0 0
    %96 = vmatpush1.bf16.msra.mxu0 0
    %97 = vmatprep.subr.bf16.mxu0 0
    %98 = vmatpush1.bf16.msra.mxu0 0
    %99 = vmatprep.subr.bf16.mxu0 0
    %100 = vmatpush1.bf16.msra.mxu0 0
    %101 = vmatprep.subr.bf16.mxu0 %v76
    %102 = vmatpush1.bf16.msra.mxu0 %v75
    %103 = vmatprep.subr.bf16.mxu0 0
    %104 = vmatpush2.bf16.msra.mxu0 0
    %105 = vmatprep.subr.bf16.mxu0 0
    %106 = vmatpush2.bf16.msra.mxu0 0
    %107 = vmatprep.subr.bf16.mxu0 0
    %108 = vmatpush2.bf16.msra.mxu0 0
    %109 = vmatprep.subr.bf16.mxu0 0
    %110 = vmatpush2.bf16.msra.mxu0 0
    %111 = vmatprep.subr.bf16.mxu0 0
    %112 = vmatpush2.bf16.msra.mxu0 0
    %113 = vmatprep.subr.bf16.mxu0 0
    %114 = vmatpush2.bf16.msra.mxu0 0
    %115 = vmatprep.subr.bf16.mxu0 0
    %116 = vmatpush2.bf16.msra.mxu0 0
    %117 = vmatprep.subr.bf16.mxu0 0
    %118 = vmatpush2.bf16.msra.mxu0 0
    %119 = vmatprep.mubr.bf16.mxu0 0
    %120 = vmatmul.mubr.bf16.gmra.mxu0 %v85
    %v121 = vpop.f32.mrf.mxu0
    %v122 = vadd.f32 0.0, %v121
    %v123 = vpop.f32.mrf.mxu0
    %v124 = vadd.f32 0.0, %v123
    %v125 = vpop.f32.mrf.mxu0
    %v126 = vpop.f32.mrf.mxu0
    %127 = vdwg.mxu0
    %128 = vmatprep.subr.bf16.mxu0 0
    %129 = vmatpush1.bf16.msra.mxu0 0
    %130 = vmatprep.subr.bf16.mxu0 0
    %131 = vmatpush1.bf16.msra.mxu0 0
    %132 = vmatprep.subr.bf16.mxu0 0
    %133 = vmatpush1.bf16.msra.mxu0 0
    %134 = vmatprep.subr.bf16.mxu0 0
    %135 = vmatpush1.bf16.msra.mxu0 0
    %136 = vmatprep.subr.bf16.mxu0 0
    %137 = vmatpush1.bf16.msra.mxu0 0
    %138 = vmatprep.subr.bf16.mxu0 0
    %139 = vmatpush1.bf16.msra.mxu0 0
    %140 = vmatprep.subr.bf16.mxu0 0
    %141 = vmatpush1.bf16.msra.mxu0 0
    %142 = vmatprep.subr.bf16.mxu0 %v78
    %143 = vmatpush1.bf16.msra.mxu0 %v77
    %144 = vmatprep.subr.bf16.mxu0 0
    %145 = vmatpush2.bf16.msra.mxu0 0
    %146 = vmatprep.subr.bf16.mxu0 0
    %147 = vmatpush2.bf16.msra.mxu0 0
    %148 = vmatprep.subr.bf16.mxu0 0
    %149 = vmatpush2.bf16.msra.mxu0 0
    %150 = vmatprep.subr.bf16.mxu0 0
    %151 = vmatpush2.bf16.msra.mxu0 0
    %152 = vmatprep.subr.bf16.mxu0 0
    %153 = vmatpush2.bf16.msra.mxu0 0
    %154 = vmatprep.subr.bf16.mxu0 0
    %155 = vmatpush2.bf16.msra.mxu0 0
    %156 = vmatprep.subr.bf16.mxu0 0
    %157 = vmatpush2.bf16.msra.mxu0 0
    %158 = vmatprep.subr.bf16.mxu0 0
    %159 = vmatpush2.bf16.msra.mxu0 0
    %160 = vmatprep.mubr.bf16.mxu0 0
    %161 = vmatmul.mubr.bf16.gmra.mxu0 %v85
    %v162 = vpop.f32.mrf.mxu0
    %v163 = vadd.f32 0.0, %v162
    %v164 = vpop.f32.mrf.mxu0
    %v165 = vadd.f32 0.0, %v164
    %v166 = vpop.f32.mrf.mxu0
    %v167 = vpop.f32.mrf.mxu0
    %168 = vdwg.mxu0
    %v169 = vmax.f32 %v122, 0.0
    %v170 = vmax.f32 %v124, 0.0
    %v171 = vmax.f32 %v163, 0.0
    %v172 = vmax.f32 %v165, 0.0
    %v173 = vld [vmem:[%s3] sm:$0xff]
    %v174 = vld [vmem:[%s3 + $0x8] sm:$0xf]
    %v175 = vld [vmem:[%s3 + $0xc] sm:$0xff]
    %v176 = vld [vmem:[%s3 + $0x14] sm:$0xf]
    %v177 = vld [vmem:[%s3 + $0x18] sm:$0xff]
    %v178 = vld [vmem:[%s3 + $0x20] sm:$0xf]
    %v179 = vld [vmem:[%s3 + $0x24] sm:$0xff]
    %v180 = vld [vmem:[%s3 + $0x2c] sm:$0xf]
    %v181 = vld [vmem:[%s3 + $0x30] sm:$0xff]
    %v182 = vld [vmem:[%s3 + $0x38] sm:$0xf]
    %v183 = vld [vmem:[%s3 + $0x3c] sm:$0xff]
    %v184 = vld [vmem:[%s3 + $0x44] sm:$0xf]
    %v185 = vld [vmem:[%s3 + $0x48] sm:$0xff]
    %v186 = vld [vmem:[%s3 + $0x50] sm:$0xf]
    %v187 = vld [vmem:[%s3 + $0x54] sm:$0xff]
    %v188 = vld [vmem:[%s3 + $0x5c] sm:$0xf]
    %v189 = vld [vmem:[%s3 + $0x60] sm:$0xff]
    %v190 = vld [vmem:[%s3 + $0x68] sm:$0xf]
    %v191 = vld [vmem:[%s3 + $0x6c] sm:$0xff]
    %v192 = vld [vmem:[%s3 + $0x74] sm:$0xf]
    %v193 = vld [vmem:[%s3 + $0x78] sm:$0xff]
    %v194 = vld [vmem:[%s3 + $0x80] sm:$0xf]
    %v195 = vld [vmem:[%s3 + $0x84] sm:$0xff]
    %v196 = vld [vmem:[%s3 + $0x8c] sm:$0xf]
    %v197 = vld [vmem:[%s3 + $0x90] sm:$0xff]
    %v198 = vld [vmem:[%s3 + $0x98] sm:$0xf]
    %v199 = vld [vmem:[%s3 + $0x9c] sm:$0xff]
    %v200 = vld [vmem:[%s3 + $0xa4] sm:$0xf]
    %v201 = vld [vmem:[%s3 + $0xa8] sm:$0xff]
    %v202 = vld [vmem:[%s3 + $0xb0] sm:$0xf]
    %v203 = vld [vmem:[%s3 + $0xb4] sm:$0xff]
    %v204 = vld [vmem:[%s3 + $0xbc] sm:$0xf]
    %v205 = vld [vmem:[%s3 + $0xc0] sm:$0xff]
    %v206 = vld [vmem:[%s3 + $0xc8] sm:$0xf]
    %v207 = vld [vmem:[%s3 + $0xcc] sm:$0xff]
    %v208 = vld [vmem:[%s3 + $0xd4] sm:$0xf]
    %v209 = vld [vmem:[%s3 + $0xd8] sm:$0xff]
    %v210 = vld [vmem:[%s3 + $0xe0] sm:$0xf]
    %v211 = vld [vmem:[%s3 + $0xe4] sm:$0xff]
    %v212 = vld [vmem:[%s3 + $0xec] sm:$0xf]
    %v213 = vld [vmem:[%s3 + $0xf0] sm:$0xff]
    %v214 = vld [vmem:[%s3 + $0xf8] sm:$0xf]
    %v215 = vld [vmem:[%s3 + $0xfc] sm:$0xff]
    %v216 = vld [vmem:[%s3 + $0x104] sm:$0xf]
    %v217 = vld [vmem:[%s3 + $0x108] sm:$0xff]
    %v218 = vld [vmem:[%s3 + $0x110] sm:$0xf]
    %v219 = vld [vmem:[%s3 + $0x114] sm:$0xff]
    %v220 = vld [vmem:[%s3 + $0x11c] sm:$0xf]
    %v221 = vld [vmem:[%s3 + $0x120] sm:$0xff]
    %v222 = vld [vmem:[%s3 + $0x128] sm:$0xf]
    %v223 = vld [vmem:[%s3 + $0x12c] sm:$0xff]
    %v224 = vld [vmem:[%s3 + $0x134] sm:$0xf]
    %v225 = vld [vmem:[%s3 + $0x138] sm:$0xff]
    %v226 = vld [vmem:[%s3 + $0x140] sm:$0xf]
    %v227 = vld [vmem:[%s3 + $0x144] sm:$0xff]
    %v228 = vld [vmem:[%s3 + $0x14c] sm:$0xf]
    %v229 = vld [vmem:[%s3 + $0x150] sm:$0xff]
    %v230 = vld [vmem:[%s3 + $0x158] sm:$0xf]
    %v231 = vld [vmem:[%s3 + $0x15c] sm:$0xff]
    %v232 = vld [vmem:[%s3 + $0x164] sm:$0xf]
    %v233 = vld [vmem:[%s3 + $0x168] sm:$0xff]
    %v234 = vld [vmem:[%s3 + $0x170] sm:$0xf]
    %v235 = vld [vmem:[%s3 + $0x174] sm:$0xff]
    %v236 = vld [vmem:[%s3 + $0x17c] sm:$0xf]
    %v237 = vld [vmem:[%s3 + $0x180] sm:$0xff]
    %v238 = vld [vmem:[%s3 + $0x188] sm:$0xf]
    %v239 = vld [vmem:[%s3 + $0x18c] sm:$0xff]
    %v240 = vld [vmem:[%s3 + $0x194] sm:$0xf]
    %v241 = vld [vmem:[%s3 + $0x198] sm:$0xff]
    %v242 = vld [vmem:[%s3 + $0x1a0] sm:$0xf]
    %v243 = vld [vmem:[%s3 + $0x1a4] sm:$0xff]
    %v244 = vld [vmem:[%s3 + $0x1ac] sm:$0xf]
    %v245 = vld [vmem:[%s3 + $0x1b0] sm:$0xff]
    %v246 = vld [vmem:[%s3 + $0x1b8] sm:$0xf]
    %v247 = vld [vmem:[%s3 + $0x1bc] sm:$0xff]
    %v248 = vld [vmem:[%s3 + $0x1c4] sm:$0xf]
    %v249 = vld [vmem:[%s3 + $0x1c8] sm:$0xff]
    %v250 = vld [vmem:[%s3 + $0x1d0] sm:$0xf]
    %v251 = vld [vmem:[%s3 + $0x1d4] sm:$0xff]
    %v252 = vld [vmem:[%s3 + $0x1dc] sm:$0xf]
    %v253 = vld [vmem:[%s3 + $0x1e0] sm:$0xff]
    %v254 = vld [vmem:[%s3 + $0x1e8] sm:$0xf]
    %v255 = vld [vmem:[%s3 + $0x1ec] sm:$0xff]
    %v256 = vld [vmem:[%s3 + $0x1f4] sm:$0xf]
    %v257 = vld [vmem:[%s3 + $0x1f8] sm:$0xff]
    %v258 = vld [vmem:[%s3 + $0x200] sm:$0xf]
    %v259 = vld [vmem:[%s3 + $0x204] sm:$0xff]
    %v260 = vld [vmem:[%s3 + $0x20c] sm:$0xf]
    %v261 = vld [vmem:[%s3 + $0x210] sm:$0xff]
    %v262 = vld [vmem:[%s3 + $0x218] sm:$0xf]
    %v263 = vld [vmem:[%s3 + $0x21c] sm:$0xff]
    %v264 = vld [vmem:[%s3 + $0x224] sm:$0xf]
    %v265 = vld [vmem:[%s3 + $0x228] sm:$0xff]
    %v266 = vld [vmem:[%s3 + $0x230] sm:$0xf]
    %v267 = vld [vmem:[%s3 + $0x234] sm:$0xff]
    %v268 = vld [vmem:[%s3 + $0x23c] sm:$0xf]
    %v269 = vld [vmem:[%s3 + $0x240] sm:$0xff]
    %v270 = vld [vmem:[%s3 + $0x248] sm:$0xf]
    %v271 = vld [vmem:[%s3 + $0x24c] sm:$0xff]
    %v272 = vld [vmem:[%s3 + $0x254] sm:$0xf]
    %v273 = vld [vmem:[%s3 + $0x258] sm:$0xff]
    %v274 = vld [vmem:[%s3 + $0x260] sm:$0xf]
    %v275 = vld [vmem:[%s3 + $0x264] sm:$0xff]
    %v276 = vld [vmem:[%s3 + $0x26c] sm:$0xf]
    %v277 = vld [vmem:[%s3 + $0x270] sm:$0xff]
    %v278 = vld [vmem:[%s3 + $0x278] sm:$0xf]
    %v279 = vld [vmem:[%s3 + $0x27c] sm:$0xff]
    %v280 = vld [vmem:[%s3 + $0x284] sm:$0xf]
    %v281 = vld [vmem:[%s3 + $0x288] sm:$0xff]
    %v282 = vld [vmem:[%s3 + $0x290] sm:$0xf]
    %v283 = vld [vmem:[%s3 + $0x294] sm:$0xff]
    %v284 = vld [vmem:[%s3 + $0x29c] sm:$0xf]
    %v285 = vld [vmem:[%s3 + $0x2a0] sm:$0xff]
    %v286 = vld [vmem:[%s3 + $0x2a8] sm:$0xf]
    %v287 = vld [vmem:[%s3 + $0x2ac] sm:$0xff]
    %v288 = vld [vmem:[%s3 + $0x2b4] sm:$0xf]
    %v289 = vld [vmem:[%s3 + $0x2b8] sm:$0xff]
    %v290 = vld [vmem:[%s3 + $0x2c0] sm:$0xf]
    %v291 = vld [vmem:[%s3 + $0x2c4] sm:$0xff]
    %v292 = vld [vmem:[%s3 + $0x2cc] sm:$0xf]
    %v293 = vld [vmem:[%s3 + $0x2d0] sm:$0xff]
    %v294 = vld [vmem:[%s3 + $0x2d8] sm:$0xf]
    %v295 = vld [vmem:[%s3 + $0x2dc] sm:$0xff]
    %v296 = vld [vmem:[%s3 + $0x2e4] sm:$0xf]
    %v297 = vld [vmem:[%s3 + $0x2e8] sm:$0x33]
    %v298 = vld [vmem:[%s3 + $0x2f0] sm:$0x3]
    %v299 = vpack.c.bf16 %v169, %v169
    %v300 = vpack.c.bf16 %v170, %v170
    %v301 = vpack.c.bf16 %v171, %v171
    %v302 = vpack.c.bf16 %v172, %v172
    %v304 = vlaneseq
    %v305 = vshrl.u32 %v304, 7
    %v306 = vsub.s32 0, %v305
    %v307 = vrot.slane %v46, %v306
    %v308 = vlaneseq
    %v309 = vshrl.u32 %v308, 7
    %v310 = vsub.s32 1, %v309
    %v311 = vrot.slane %v46, %v310
    %v312 = vlaneseq
    %v313 = vshrl.u32 %v312, 7
    %v314 = vsub.s32 2, %v313
    %v315 = vrot.slane %v46, %v314
    %v445 = vunpack.c.l.b16 %v173
    %v446 = vunpack.c.h.b16 %v173
    %v447 = vunpack.c.l.b16 %v174
    %v448 = vunpack.c.l.b16 %v175
    %v449 = vunpack.c.h.b16 %v175
    %v450 = vunpack.c.l.b16 %v176
    %v451 = vunpack.c.l.b16 %v177
    %v452 = vunpack.c.h.b16 %v177
    %v453 = vunpack.c.l.b16 %v178
    %v454 = vunpack.c.l.b16 %v179
    %v455 = vunpack.c.h.b16 %v179
    %v456 = vunpack.c.l.b16 %v180
    %v457 = vunpack.c.l.b16 %v181
    %v458 = vunpack.c.h.b16 %v181
    %v459 = vunpack.c.l.b16 %v182
    %v460 = vunpack.c.l.b16 %v183
    %v461 = vunpack.c.h.b16 %v183
    %v462 = vunpack.c.l.b16 %v184
    %v463 = vunpack.c.l.b16 %v185
    %v464 = vunpack.c.h.b16 %v185
    %v465 = vunpack.c.l.b16 %v186
    %v466 = vunpack.c.l.b16 %v187
    %v467 = vunpack.c.h.b16 %v187
    %v468 = vunpack.c.l.b16 %v188
    %v469 = vunpack.c.l.b16 %v189
    %v470 = vunpack.c.h.b16 %v189
    %v471 = vunpack.c.l.b16 %v190
    %v472 = vunpack.c.l.b16 %v191
    %v473 = vunpack.c.h.b16 %v191
    %v474 = vunpack.c.l.b16 %v192
    %v475 = vunpack.c.l.b16 %v193
    %v476 = vunpack.c.h.b16 %v193
    %v477 = vunpack.c.l.b16 %v194
    %v478 = vunpack.c.l.b16 %v195
    %v479 = vunpack.c.h.b16 %v195
    %v480 = vunpack.c.l.b16 %v196
    %v481 = vunpack.c.l.b16 %v197
    %v482 = vunpack.c.h.b16 %v197
    %v483 = vunpack.c.l.b16 %v198
    %v484 = vunpack.c.l.b16 %v199
    %v485 = vunpack.c.h.b16 %v199
    %v486 = vunpack.c.l.b16 %v200
    %v487 = vunpack.c.l.b16 %v201
    %v488 = vunpack.c.h.b16 %v201
    %v489 = vunpack.c.l.b16 %v202
    %v490 = vunpack.c.l.b16 %v203
    %v491 = vunpack.c.h.b16 %v203
    %v492 = vunpack.c.l.b16 %v204
    %v493 = vunpack.c.l.b16 %v205
    %v494 = vunpack.c.h.b16 %v205
    %v495 = vunpack.c.l.b16 %v206
    %v496 = vunpack.c.l.b16 %v207
    %v497 = vunpack.c.h.b16 %v207
    %v498 = vunpack.c.l.b16 %v208
    %v499 = vunpack.c.l.b16 %v209
    %v500 = vunpack.c.h.b16 %v209
    %v501 = vunpack.c.l.b16 %v210
    %v502 = vunpack.c.l.b16 %v211
    %v503 = vunpack.c.h.b16 %v211
    %v504 = vunpack.c.l.b16 %v212
    %v505 = vunpack.c.l.b16 %v213
    %v506 = vunpack.c.h.b16 %v213
    %v507 = vunpack.c.l.b16 %v214
    %v508 = vunpack.c.l.b16 %v215
    %v509 = vunpack.c.h.b16 %v215
    %v510 = vunpack.c.l.b16 %v216
    %v511 = vunpack.c.l.b16 %v217
    %v512 = vunpack.c.h.b16 %v217
    %v513 = vunpack.c.l.b16 %v218
    %v514 = vunpack.c.l.b16 %v219
    %v515 = vunpack.c.h.b16 %v219
    %v516 = vunpack.c.l.b16 %v220
    %v517 = vunpack.c.l.b16 %v221
    %v518 = vunpack.c.h.b16 %v221
    %v519 = vunpack.c.l.b16 %v222
    %v520 = vunpack.c.l.b16 %v223
    %v521 = vunpack.c.h.b16 %v223
    %v522 = vunpack.c.l.b16 %v224
    %v523 = vunpack.c.l.b16 %v225
    %v524 = vunpack.c.h.b16 %v225
    %v525 = vunpack.c.l.b16 %v226
    %v526 = vunpack.c.l.b16 %v227
    %v527 = vunpack.c.h.b16 %v227
    %v528 = vunpack.c.l.b16 %v228
    %v529 = vunpack.c.l.b16 %v229
    %v530 = vunpack.c.h.b16 %v229
    %v531 = vunpack.c.l.b16 %v230
    %v532 = vunpack.c.l.b16 %v231
    %v533 = vunpack.c.h.b16 %v231
    %v534 = vunpack.c.l.b16 %v232
    %v535 = vunpack.c.l.b16 %v233
    %v536 = vunpack.c.h.b16 %v233
    %v537 = vunpack.c.l.b16 %v234
    %v538 = vunpack.c.l.b16 %v235
    %v539 = vunpack.c.h.b16 %v235
    %v540 = vunpack.c.l.b16 %v236
    %v541 = vunpack.c.l.b16 %v237
    %v542 = vunpack.c.h.b16 %v237
    %v543 = vunpack.c.l.b16 %v238
    %v544 = vunpack.c.l.b16 %v239
    %v545 = vunpack.c.h.b16 %v239
    %v546 = vunpack.c.l.b16 %v240
    %v547 = vunpack.c.l.b16 %v241
    %v548 = vunpack.c.h.b16 %v241
    %v549 = vunpack.c.l.b16 %v242
    %v550 = vunpack.c.l.b16 %v243
    %v551 = vunpack.c.h.b16 %v243
    %v552 = vunpack.c.l.b16 %v244
    %v553 = vunpack.c.l.b16 %v245
    %v554 = vunpack.c.h.b16 %v245
    %v555 = vunpack.c.l.b16 %v246
    %v556 = vunpack.c.l.b16 %v247
    %v557 = vunpack.c.h.b16 %v247
    %v558 = vunpack.c.l.b16 %v248
    %v559 = vunpack.c.l.b16 %v249
    %v560 = vunpack.c.h.b16 %v249
    %v561 = vunpack.c.l.b16 %v250
    %v562 = vunpack.c.l.b16 %v251
    %v563 = vunpack.c.h.b16 %v251
    %v564 = vunpack.c.l.b16 %v252
    %v565 = vunpack.c.l.b16 %v253
    %v566 = vunpack.c.h.b16 %v253
    %v567 = vunpack.c.l.b16 %v254
    %v568 = vunpack.c.l.b16 %v255
    %v569 = vunpack.c.h.b16 %v255
    %v570 = vunpack.c.l.b16 %v256
    %v571 = vunpack.c.l.b16 %v257
    %v572 = vunpack.c.h.b16 %v257
    %v573 = vunpack.c.l.b16 %v258
    %v574 = vunpack.c.l.b16 %v259
    %v575 = vunpack.c.h.b16 %v259
    %v576 = vunpack.c.l.b16 %v260
    %v577 = vunpack.c.l.b16 %v261
    %v578 = vunpack.c.h.b16 %v261
    %v579 = vunpack.c.l.b16 %v262
    %v580 = vunpack.c.l.b16 %v263
    %v581 = vunpack.c.h.b16 %v263
    %v582 = vunpack.c.l.b16 %v264
    %v583 = vunpack.c.l.b16 %v265
    %v584 = vunpack.c.h.b16 %v265
    %v585 = vunpack.c.l.b16 %v266
    %v586 = vunpack.c.l.b16 %v267
    %v587 = vunpack.c.h.b16 %v267
    %v588 = vunpack.c.l.b16 %v268
    %v589 = vunpack.c.l.b16 %v269
    %v590 = vunpack.c.h.b16 %v269
    %v591 = vunpack.c.l.b16 %v270
    %v592 = vunpack.c.l.b16 %v271
    %v593 = vunpack.c.h.b16 %v271
    %v594 = vunpack.c.l.b16 %v272
    %v595 = vunpack.c.l.b16 %v273
    %v596 = vunpack.c.h.b16 %v273
    %v597 = vunpack.c.l.b16 %v274
    %v598 = vunpack.c.l.b16 %v275
    %v599 = vunpack.c.h.b16 %v275
    %v600 = vunpack.c.l.b16 %v276
    %v601 = vunpack.c.l.b16 %v277
    %v602 = vunpack.c.h.b16 %v277
    %v603 = vunpack.c.l.b16 %v278
    %v604 = vunpack.c.l.b16 %v279
    %v605 = vunpack.c.h.b16 %v279
    %v606 = vunpack.c.l.b16 %v280
    %v607 = vunpack.c.l.b16 %v281
    %v608 = vunpack.c.h.b16 %v281
    %v609 = vunpack.c.l.b16 %v282
    %v610 = vunpack.c.l.b16 %v283
    %v611 = vunpack.c.h.b16 %v283
    %v612 = vunpack.c.l.b16 %v284
    %v613 = vunpack.c.l.b16 %v285
    %v614 = vunpack.c.h.b16 %v285
    %v615 = vunpack.c.l.b16 %v286
    %v616 = vunpack.c.l.b16 %v287
    %v617 = vunpack.c.h.b16 %v287
    %v618 = vunpack.c.l.b16 %v288
    %v619 = vunpack.c.l.b16 %v289
    %v620 = vunpack.c.h.b16 %v289
    %v621 = vunpack.c.l.b16 %v290
    %v622 = vunpack.c.l.b16 %v291
    %v623 = vunpack.c.h.b16 %v291
    %v624 = vunpack.c.l.b16 %v292
    %v625 = vunpack.c.l.b16 %v293
    %v626 = vunpack.c.h.b16 %v293
    %v627 = vunpack.c.l.b16 %v294
    %v628 = vunpack.c.l.b16 %v295
    %v629 = vunpack.c.h.b16 %v295
    %v630 = vunpack.c.l.b16 %v296
    %v631 = vunpack.c.l.b16 %v297
    %v632 = vunpack.c.h.b16 %v297
    %v633 = vunpack.c.l.b16 %v298
    %v634 = vpack.c.b16 %v448, %v445
    %v635 = vpack.c.b16 %v449, %v446
    %v636 = vpack.c.b16 %v450, %v447
    %v637 = vpack.c.b16 %v454, %v451
    %v638 = vpack.c.b16 %v455, %v452
    %v639 = vpack.c.b16 %v456, %v453
    %v640 = vpack.c.b16 %v460, %v457
    %v641 = vpack.c.b16 %v461, %v458
    %v642 = vpack.c.b16 %v462, %v459
    %v643 = vpack.c.b16 %v466, %v463
    %v644 = vpack.c.b16 %v467, %v464
    %v645 = vpack.c.b16 %v468, %v465
    %v646 = vpack.c.b16 %v472, %v469
    %v647 = vpack.c.b16 %v473, %v470
    %v648 = vpack.c.b16 %v474, %v471
    %v649 = vpack.c.b16 %v478, %v475
    %v650 = vpack.c.b16 %v479, %v476
    %v651 = vpack.c.b16 %v480, %v477
    %v652 = vpack.c.b16 %v484, %v481
    %v653 = vpack.c.b16 %v485, %v482
    %v654 = vpack.c.b16 %v486, %v483
    %v655 = vpack.c.b16 %v490, %v487
    %v656 = vpack.c.b16 %v491, %v488
    %v657 = vpack.c.b16 %v492, %v489
    %v658 = vpack.c.b16 %v496, %v493
    %v659 = vpack.c.b16 %v497, %v494
    %v660 = vpack.c.b16 %v498, %v495
    %v661 = vpack.c.b16 %v502, %v499
    %v662 = vpack.c.b16 %v503, %v500
    %v663 = vpack.c.b16 %v504, %v501
    %v664 = vpack.c.b16 %v508, %v505
    %v665 = vpack.c.b16 %v509, %v506
    %v666 = vpack.c.b16 %v510, %v507
    %v667 = vpack.c.b16 %v514, %v511
    %v668 = vpack.c.b16 %v515, %v512
    %v669 = vpack.c.b16 %v516, %v513
    %v670 = vpack.c.b16 %v520, %v517
    %v671 = vpack.c.b16 %v521, %v518
    %v672 = vpack.c.b16 %v522, %v519
    %v673 = vpack.c.b16 %v526, %v523
    %v674 = vpack.c.b16 %v527, %v524
    %v675 = vpack.c.b16 %v528, %v525
    %v676 = vpack.c.b16 %v532, %v529
    %v677 = vpack.c.b16 %v533, %v530
    %v678 = vpack.c.b16 %v534, %v531
    %v679 = vpack.c.b16 %v538, %v535
    %v680 = vpack.c.b16 %v539, %v536
    %v681 = vpack.c.b16 %v540, %v537
    %v682 = vpack.c.b16 %v544, %v541
    %v683 = vpack.c.b16 %v545, %v542
    %v684 = vpack.c.b16 %v546, %v543
    %v685 = vpack.c.b16 %v550, %v547
    %v686 = vpack.c.b16 %v551, %v548
    %v687 = vpack.c.b16 %v552, %v549
    %v688 = vpack.c.b16 %v556, %v553
    %v689 = vpack.c.b16 %v557, %v554
    %v690 = vpack.c.b16 %v558, %v555
    %v691 = vpack.c.b16 %v562, %v559
    %v692 = vpack.c.b16 %v563, %v560
    %v693 = vpack.c.b16 %v564, %v561
    %v694 = vpack.c.b16 %v568, %v565
    %v695 = vpack.c.b16 %v569, %v566
    %v696 = vpack.c.b16 %v570, %v567
    %v697 = vpack.c.b16 %v574, %v571
    %v698 = vpack.c.b16 %v575, %v572
    %v699 = vpack.c.b16 %v576, %v573
    %v700 = vpack.c.b16 %v580, %v577
    %v701 = vpack.c.b16 %v581, %v578
    %v702 = vpack.c.b16 %v582, %v579
    %v703 = vpack.c.b16 %v586, %v583
    %v704 = vpack.c.b16 %v587, %v584
    %v705 = vpack.c.b16 %v588, %v585
    %v706 = vpack.c.b16 %v592, %v589
    %v707 = vpack.c.b16 %v593, %v590
    %v708 = vpack.c.b16 %v594, %v591
    %v709 = vpack.c.b16 %v598, %v595
    %v710 = vpack.c.b16 %v599, %v596
    %v711 = vpack.c.b16 %v600, %v597
    %v712 = vpack.c.b16 %v604, %v601
    %v713 = vpack.c.b16 %v605, %v602
    %v714 = vpack.c.b16 %v606, %v603
    %v715 = vpack.c.b16 %v610, %v607
    %v716 = vpack.c.b16 %v611, %v608
    %v717 = vpack.c.b16 %v612, %v609
    %v718 = vpack.c.b16 %v616, %v613
    %v719 = vpack.c.b16 %v617, %v614
    %v720 = vpack.c.b16 %v618, %v615
    %v721 = vpack.c.b16 %v622, %v619
    %v722 = vpack.c.b16 %v623, %v620
    %v723 = vpack.c.b16 %v624, %v621
    %v724 = vpack.c.b16 %v628, %v625
    %v725 = vpack.c.b16 %v629, %v626
    %v726 = vpack.c.b16 %v630, %v627
    %v727 = vpack.c.b16 %v631, %v631
    %v728 = vpack.c.b16 %v632, %v632
    %v729 = vpack.c.b16 %v633, %v633
    %vm823 = vcmask 949248
    %v825 = vsel %vm823, %v302, 0
    %vm827 = vcmask 1041408
    %v829 = vsel %vm827, %v727, 0
    %v832 = vsel %vm827, %v728, 0
    %v835 = vsel %vm827, %v729, 0
    %837 = vmatprep.subr.bf16.mxu0 %v656
    %838 = vmatpush1.bf16.msra.mxu0 %v655
    %839 = vmatprep.subr.bf16.mxu0 %v653
    %840 = vmatpush1.bf16.msra.mxu0 %v652
    %841 = vmatprep.subr.bf16.mxu0 %v650
    %842 = vmatpush1.bf16.msra.mxu0 %v649
    %843 = vmatprep.subr.bf16.mxu0 %v647
    %844 = vmatpush1.bf16.msra.mxu0 %v646
    %845 = vmatprep.subr.bf16.mxu0 %v644
    %846 = vmatpush1.bf16.msra.mxu0 %v643
    %847 = vmatprep.subr.bf16.mxu0 %v641
    %848 = vmatpush1.bf16.msra.mxu0 %v640
    %849 = vmatprep.subr.bf16.mxu0 %v638
    %850 = vmatpush1.bf16.msra.mxu0 %v637
    %851 = vmatprep.subr.bf16.mxu0 %v635
    %852 = vmatpush1.bf16.msra.mxu0 %v634
    %853 = vmatprep.subr.bf16.mxu0 %v680
    %854 = vmatpush2.bf16.msra.mxu0 %v679
    %855 = vmatprep.subr.bf16.mxu0 %v677
    %856 = vmatpush2.bf16.msra.mxu0 %v676
    %857 = vmatprep.subr.bf16.mxu0 %v674
    %858 = vmatpush2.bf16.msra.mxu0 %v673
    %859 = vmatprep.subr.bf16.mxu0 %v671
    %860 = vmatpush2.bf16.msra.mxu0 %v670
    %861 = vmatprep.subr.bf16.mxu0 %v668
    %862 = vmatpush2.bf16.msra.mxu0 %v667
    %863 = vmatprep.subr.bf16.mxu0 %v665
    %864 = vmatpush2.bf16.msra.mxu0 %v664
    %865 = vmatprep.subr.bf16.mxu0 %v662
    %866 = vmatpush2.bf16.msra.mxu0 %v661
    %867 = vmatprep.subr.bf16.mxu0 %v659
    %868 = vmatpush2.bf16.msra.mxu0 %v658
    %869 = vmatprep.mubr.bf16.mxu0 %v300
    %870 = vmatmul.mubr.bf16.gmra.mxu0 %v299
    %v871 = vpop.f32.mrf.mxu0
    %v872 = vadd.f32 %v307, %v871
    %v873 = vpop.f32.mrf.mxu0
    %v874 = vadd.f32 %v311, %v873
    %v875 = vpop.f32.mrf.mxu0
    %v876 = vpop.f32.mrf.mxu0
    %877 = vdwg.mxu0
    %878 = vmatprep.subr.bf16.mxu0 %v704
    %879 = vmatpush1.bf16.msra.mxu0 %v703
    %880 = vmatprep.subr.bf16.mxu0 %v701
    %881 = vmatpush1.bf16.msra.mxu0 %v700
    %882 = vmatprep.subr.bf16.mxu0 %v698
    %883 = vmatpush1.bf16.msra.mxu0 %v697
    %884 = vmatprep.subr.bf16.mxu0 %v695
    %885 = vmatpush1.bf16.msra.mxu0 %v694
    %886 = vmatprep.subr.bf16.mxu0 %v692
    %887 = vmatpush1.bf16.msra.mxu0 %v691
    %888 = vmatprep.subr.bf16.mxu0 %v689
    %889 = vmatpush1.bf16.msra.mxu0 %v688
    %890 = vmatprep.subr.bf16.mxu0 %v686
    %891 = vmatpush1.bf16.msra.mxu0 %v685
    %892 = vmatprep.subr.bf16.mxu0 %v683
    %893 = vmatpush1.bf16.msra.mxu0 %v682
    %894 = vmatprep.subr.bf16.mxu0 %v832
    %895 = vmatpush2.bf16.msra.mxu0 %v829
    %896 = vmatprep.subr.bf16.mxu0 %v725
    %897 = vmatpush2.bf16.msra.mxu0 %v724
    %898 = vmatprep.subr.bf16.mxu0 %v722
    %899 = vmatpush2.bf16.msra.mxu0 %v721
    %900 = vmatprep.subr.bf16.mxu0 %v719
    %901 = vmatpush2.bf16.msra.mxu0 %v718
    %902 = vmatprep.subr.bf16.mxu0 %v716
    %903 = vmatpush2.bf16.msra.mxu0 %v715
    %904 = vmatprep.subr.bf16.mxu0 %v713
    %905 = vmatpush2.bf16.msra.mxu0 %v712
    %906 = vmatprep.subr.bf16.mxu0 %v710
    %907 = vmatpush2.bf16.msra.mxu0 %v709
    %908 = vmatprep.subr.bf16.mxu0 %v707
    %909 = vmatpush2.bf16.msra.mxu0 %v706
    %910 = vmatprep.mubr.bf16.mxu0 %v825
    %911 = vmatmul.mubr.bf16.gmra.mxu0 %v301
    %v912 = vpop.f32.mrf.mxu0
    %v913 = vadd.f32 %v872, %v912
    %v914 = vpop.f32.mrf.mxu0
    %v915 = vadd.f32 %v874, %v914
    %v916 = vpop.f32.mrf.mxu0
    %v917 = vpop.f32.mrf.mxu0
    %918 = vdwg.mxu0
    %919 = vmatprep.subr.bf16.mxu0 0
    %920 = vmatpush1.bf16.msra.mxu0 %v657
    %921 = vmatprep.subr.bf16.mxu0 0
    %922 = vmatpush1.bf16.msra.mxu0 %v654
    %923 = vmatprep.subr.bf16.mxu0 0
    %924 = vmatpush1.bf16.msra.mxu0 %v651
    %925 = vmatprep.subr.bf16.mxu0 0
    %926 = vmatpush1.bf16.msra.mxu0 %v648
    %927 = vmatprep.subr.bf16.mxu0 0
    %928 = vmatpush1.bf16.msra.mxu0 %v645
    %929 = vmatprep.subr.bf16.mxu0 0
    %930 = vmatpush1.bf16.msra.mxu0 %v642
    %931 = vmatprep.subr.bf16.mxu0 0
    %932 = vmatpush1.bf16.msra.mxu0 %v639
    %933 = vmatprep.subr.bf16.mxu0 0
    %934 = vmatpush1.bf16.msra.mxu0 %v636
    %935 = vmatprep.subr.bf16.mxu0 0
    %936 = vmatpush2.bf16.msra.mxu0 %v681
    %937 = vmatprep.subr.bf16.mxu0 0
    %938 = vmatpush2.bf16.msra.mxu0 %v678
    %939 = vmatprep.subr.bf16.mxu0 0
    %940 = vmatpush2.bf16.msra.mxu0 %v675
    %941 = vmatprep.subr.bf16.mxu0 0
    %942 = vmatpush2.bf16.msra.mxu0 %v672
    %943 = vmatprep.subr.bf16.mxu0 0
    %944 = vmatpush2.bf16.msra.mxu0 %v669
    %945 = vmatprep.subr.bf16.mxu0 0
    %946 = vmatpush2.bf16.msra.mxu0 %v666
    %947 = vmatprep.subr.bf16.mxu0 0
    %948 = vmatpush2.bf16.msra.mxu0 %v663
    %949 = vmatprep.subr.bf16.mxu0 0
    %950 = vmatpush2.bf16.msra.mxu0 %v660
    %951 = vmatprep.mubr.bf16.mxu0 %v300
    %952 = vmatmul.mubr.bf16.gmra.mxu0 %v299
    %v953 = vpop.f32.mrf.mxu0
    %v954 = vadd.f32 %v315, %v953
    %v955 = vpop.f32.mrf.mxu0
    %v956 = vpop.f32.mrf.mxu0
    %v957 = vpop.f32.mrf.mxu0
    %958 = vdwg.mxu0
    %959 = vmatprep.subr.bf16.mxu0 0
    %960 = vmatpush1.bf16.msra.mxu0 %v705
    %961 = vmatprep.subr.bf16.mxu0 0
    %962 = vmatpush1.bf16.msra.mxu0 %v702
    %963 = vmatprep.subr.bf16.mxu0 0
    %964 = vmatpush1.bf16.msra.mxu0 %v699
    %965 = vmatprep.subr.bf16.mxu0 0
    %966 = vmatpush1.bf16.msra.mxu0 %v696
    %967 = vmatprep.subr.bf16.mxu0 0
    %968 = vmatpush1.bf16.msra.mxu0 %v693
    %969 = vmatprep.subr.bf16.mxu0 0
    %970 = vmatpush1.bf16.msra.mxu0 %v690
    %971 = vmatprep.subr.bf16.mxu0 0
    %972 = vmatpush1.bf16.msra.mxu0 %v687
    %973 = vmatprep.subr.bf16.mxu0 0
    %974 = vmatpush1.bf16.msra.mxu0 %v684
    %975 = vmatprep.subr.bf16.mxu0 0
    %976 = vmatpush2.bf16.msra.mxu0 %v835
    %977 = vmatprep.subr.bf16.mxu0 0
    %978 = vmatpush2.bf16.msra.mxu0 %v726
    %979 = vmatprep.subr.bf16.mxu0 0
    %980 = vmatpush2.bf16.msra.mxu0 %v723
    %981 = vmatprep.subr.bf16.mxu0 0
    %982 = vmatpush2.bf16.msra.mxu0 %v720
    %983 = vmatprep.subr.bf16.mxu0 0
    %984 = vmatpush2.bf16.msra.mxu0 %v717
    %985 = vmatprep.subr.bf16.mxu0 0
    %986 = vmatpush2.bf16.msra.mxu0 %v714
    %987 = vmatprep.subr.bf16.mxu0 0
    %988 = vmatpush2.bf16.msra.mxu0 %v711
    %989 = vmatprep.subr.bf16.mxu0 0
    %990 = vmatpush2.bf16.msra.mxu0 %v708
    %991 = vmatprep.mubr.bf16.mxu0 %v825
    %992 = vmatmul.mubr.bf16.gmra.mxu0 %v301
    %v993 = vpop.f32.mrf.mxu0
    %v994 = vadd.f32 %v954, %v993
    %v995 = vpop.f32.mrf.mxu0
    %v996 = vpop.f32.mrf.mxu0
    %v997 = vpop.f32.mrf.mxu0
    %998 = vdwg.mxu0
    %v999 = vmax.f32 %v913, 0.0
    %v1000 = vmax.f32 %v915, 0.0
    %v1001 = vmax.f32 %v994, 0.0
    %v1002 = vld [vmem:[%s1] sm:$0xff]
    %v1003 = vld [vmem:[%s5] sm:$0xff]
    %v1004 = vld [vmem:[%s5 + $0x8] sm:$0xf]
    %v1005 = vld [vmem:[%s5 + $0xc] sm:$0xff]
    %v1006 = vld [vmem:[%s5 + $0x14] sm:$0xf]
    %v1007 = vpack.c.bf16 %v1002, %v1002
    %v1012 = vunpack.c.l.b16 %v1003
    %v1013 = vunpack.c.h.b16 %v1003
    %v1014 = vunpack.c.l.b16 %v1004
    %v1015 = vunpack.c.l.b16 %v1005
    %v1016 = vunpack.c.h.b16 %v1005
    %v1017 = vunpack.c.l.b16 %v1006
    %v1018 = vpack.c.b16 %v1015, %v1012
    %v1019 = vpack.c.b16 %v1016, %v1013
    %v1020 = vpack.c.b16 %v1017, %v1014
    %v1025 = vsel %vm83, %v1007, 0
    %1027 = vmatprep.subr.bf16.mxu0 0
    %1028 = vmatpush1.bf16.msra.mxu0 0
    %1029 = vmatprep.subr.bf16.mxu0 0
    %1030 = vmatpush1.bf16.msra.mxu0 0
    %1031 = vmatprep.subr.bf16.mxu0 0
    %1032 = vmatpush1.bf16.msra.mxu0 0
    %1033 = vmatprep.subr.bf16.mxu0 0
    %1034 = vmatpush1.bf16.msra.mxu0 0
    %1035 = vmatprep.subr.bf16.mxu0 0
    %1036 = vmatpush1.bf16.msra.mxu0 0
    %1037 = vmatprep.subr.bf16.mxu0 0
    %1038 = vmatpush1.bf16.msra.mxu0 0
    %1039 = vmatprep.subr.bf16.mxu0 0
    %1040 = vmatpush1.bf16.msra.mxu0 0
    %1041 = vmatprep.subr.bf16.mxu0 %v1019
    %1042 = vmatpush1.bf16.msra.mxu0 %v1018
    %1043 = vmatprep.subr.bf16.mxu0 0
    %1044 = vmatpush2.bf16.msra.mxu0 0
    %1045 = vmatprep.subr.bf16.mxu0 0
    %1046 = vmatpush2.bf16.msra.mxu0 0
    %1047 = vmatprep.subr.bf16.mxu0 0
    %1048 = vmatpush2.bf16.msra.mxu0 0
    %1049 = vmatprep.subr.bf16.mxu0 0
    %1050 = vmatpush2.bf16.msra.mxu0 0
    %1051 = vmatprep.subr.bf16.mxu0 0
    %1052 = vmatpush2.bf16.msra.mxu0 0
    %1053 = vmatprep.subr.bf16.mxu0 0
    %1054 = vmatpush2.bf16.msra.mxu0 0
    %1055 = vmatprep.subr.bf16.mxu0 0
    %1056 = vmatpush2.bf16.msra.mxu0 0
    %1057 = vmatprep.subr.bf16.mxu0 0
    %1058 = vmatpush2.bf16.msra.mxu0 0
    %1059 = vmatprep.mubr.bf16.mxu0 0
    %1060 = vmatmul.mubr.bf16.gmra.mxu0 %v1025
    %v1061 = vpop.f32.mrf.mxu0
    %v1062 = vadd.f32 0.0, %v1061
    %v1063 = vpop.f32.mrf.mxu0
    %v1064 = vadd.f32 0.0, %v1063
    %v1065 = vpop.f32.mrf.mxu0
    %v1066 = vpop.f32.mrf.mxu0
    %1067 = vdwg.mxu0
    %1068 = vmatprep.subr.bf16.mxu0 0
    %1069 = vmatpush1.bf16.msra.mxu0 0
    %1070 = vmatprep.subr.bf16.mxu0 0
    %1071 = vmatpush1.bf16.msra.mxu0 0
    %1072 = vmatprep.subr.bf16.mxu0 0
    %1073 = vmatpush1.bf16.msra.mxu0 0
    %1074 = vmatprep.subr.bf16.mxu0 0
    %1075 = vmatpush1.bf16.msra.mxu0 0
    %1076 = vmatprep.subr.bf16.mxu0 0
    %1077 = vmatpush1.bf16.msra.mxu0 0
    %1078 = vmatprep.subr.bf16.mxu0 0
    %1079 = vmatpush1.bf16.msra.mxu0 0
    %1080 = vmatprep.subr.bf16.mxu0 0
    %1081 = vmatpush1.bf16.msra.mxu0 0
    %1082 = vmatprep.subr.bf16.mxu0 0
    %1083 = vmatpush1.bf16.msra.mxu0 %v1020
    %1084 = vmatprep.subr.bf16.mxu0 0
    %1085 = vmatpush2.bf16.msra.mxu0 0
    %1086 = vmatprep.subr.bf16.mxu0 0
    %1087 = vmatpush2.bf16.msra.mxu0 0
    %1088 = vmatprep.subr.bf16.mxu0 0
    %1089 = vmatpush2.bf16.msra.mxu0 0
    %1090 = vmatprep.subr.bf16.mxu0 0
    %1091 = vmatpush2.bf16.msra.mxu0 0
    %1092 = vmatprep.subr.bf16.mxu0 0
    %1093 = vmatpush2.bf16.msra.mxu0 0
    %1094 = vmatprep.subr.bf16.mxu0 0
    %1095 = vmatpush2.bf16.msra.mxu0 0
    %1096 = vmatprep.subr.bf16.mxu0 0
    %1097 = vmatpush2.bf16.msra.mxu0 0
    %1098 = vmatprep.subr.bf16.mxu0 0
    %1099 = vmatpush2.bf16.msra.mxu0 0
    %1100 = vmatprep.mubr.bf16.mxu0 0
    %1101 = vmatmul.mubr.bf16.gmra.mxu0 %v1025
    %v1102 = vpop.f32.mrf.mxu0
    %v1103 = vadd.f32 0.0, %v1102
    %v1104 = vpop.f32.mrf.mxu0
    %v1105 = vpop.f32.mrf.mxu0
    %v1106 = vpop.f32.mrf.mxu0
    %1107 = vdwg.mxu0
    %v1108 = vmax.f32 %v1062, 0.0
    %v1109 = vmax.f32 %v1064, 0.0
    %v1110 = vmax.f32 %v1103, 0.0
    %v1111 = vld [vmem:[%s4] sm:$0xf]
    %v1112 = vld [vmem:[%s4 + $0x4] sm:$0xf]
    %v1113 = vld [vmem:[%s4 + $0x8] sm:$0xf]
    %v1114 = vld [vmem:[%s4 + $0xc] sm:$0xf]
    %v1115 = vld [vmem:[%s4 + $0x10] sm:$0xf]
    %v1116 = vld [vmem:[%s4 + $0x14] sm:$0xf]
    %v1117 = vld [vmem:[%s4 + $0x18] sm:$0xf]
    %v1118 = vld [vmem:[%s4 + $0x1c] sm:$0xf]
    %v1119 = vld [vmem:[%s4 + $0x20] sm:$0xf]
    %v1120 = vld [vmem:[%s4 + $0x24] sm:$0xf]
    %v1121 = vld [vmem:[%s4 + $0x28] sm:$0xf]
    %v1122 = vld [vmem:[%s4 + $0x2c] sm:$0xf]
    %v1123 = vld [vmem:[%s4 + $0x30] sm:$0xf]
    %v1124 = vld [vmem:[%s4 + $0x34] sm:$0xf]
    %v1125 = vld [vmem:[%s4 + $0x38] sm:$0xf]
    %v1126 = vld [vmem:[%s4 + $0x3c] sm:$0xf]
    %v1127 = vld [vmem:[%s4 + $0x40] sm:$0xf]
    %v1128 = vld [vmem:[%s4 + $0x44] sm:$0xf]
    %v1129 = vld [vmem:[%s4 + $0x48] sm:$0xf]
    %v1130 = vld [vmem:[%s4 + $0x4c] sm:$0xf]
    %v1131 = vld [vmem:[%s4 + $0x50] sm:$0xf]
    %v1132 = vld [vmem:[%s4 + $0x54] sm:$0xf]
    %v1133 = vld [vmem:[%s4 + $0x58] sm:$0xf]
    %v1134 = vld [vmem:[%s4 + $0x5c] sm:$0xf]
    %v1135 = vld [vmem:[%s4 + $0x60] sm:$0xf]
    %v1136 = vld [vmem:[%s4 + $0x64] sm:$0xf]
    %v1137 = vld [vmem:[%s4 + $0x68] sm:$0xf]
    %v1138 = vld [vmem:[%s4 + $0x6c] sm:$0xf]
    %v1139 = vld [vmem:[%s4 + $0x70] sm:$0xf]
    %v1140 = vld [vmem:[%s4 + $0x74] sm:$0xf]
    %v1141 = vld [vmem:[%s4 + $0x78] sm:$0xf]
    %v1142 = vld [vmem:[%s4 + $0x7c] sm:$0xf]
    %v1143 = vld [vmem:[%s4 + $0x80] sm:$0xf]
    %v1144 = vld [vmem:[%s4 + $0x84] sm:$0xf]
    %v1145 = vld [vmem:[%s4 + $0x88] sm:$0xf]
    %v1146 = vld [vmem:[%s4 + $0x8c] sm:$0xf]
    %v1147 = vld [vmem:[%s4 + $0x90] sm:$0xf]
    %v1148 = vld [vmem:[%s4 + $0x94] sm:$0x3]
    %v1149 = vpack.c.bf16 %v999, %v999
    %v1150 = vpack.c.bf16 %v1000, %v1000
    %v1151 = vpack.c.bf16 %v1001, %v1001
    %v1152 = vld [vmem:[%s6] sm:$0xf]
    %v1153 = vld [vmem:[%s6 + $0x4] sm:$0xf]
    %v1154 = vld [vmem:[%s6 + $0x8] sm:$0xf]
    %v1155 = vld [vmem:[%s6 + $0xc] sm:$0xf]
    %v1156 = vld [vmem:[%s6 + $0x10] sm:$0xf]
    %v1157 = vld [vmem:[%s6 + $0x14] sm:$0xf]
    %v1158 = vld [vmem:[%s6 + $0x18] sm:$0xf]
    %v1159 = vld [vmem:[%s6 + $0x1c] sm:$0xf]
    %v1160 = vld [vmem:[%s6 + $0x20] sm:$0xf]
    %v1161 = vld [vmem:[%s6 + $0x24] sm:$0xf]
    %v1162 = vld [vmem:[%s6 + $0x28] sm:$0xf]
    %v1163 = vld [vmem:[%s6 + $0x2c] sm:$0xf]
    %v1164 = vld [vmem:[%s6 + $0x30] sm:$0xf]
    %v1165 = vld [vmem:[%s6 + $0x34] sm:$0xf]
    %v1166 = vld [vmem:[%s6 + $0x38] sm:$0xf]
    %v1167 = vld [vmem:[%s6 + $0x3c] sm:$0xf]
    %v1168 = vld [vmem:[%s6 + $0x40] sm:$0xf]
    %v1169 = vld [vmem:[%s6 + $0x44] sm:$0xf]
    %v1170 = vld [vmem:[%s6 + $0x48] sm:$0xf]
    %v1171 = vld [vmem:[%s6 + $0x4c] sm:$0xf]
    %v1172 = vld [vmem:[%s6 + $0x50] sm:$0xf]
    %v1173 = vld [vmem:[%s6 + $0x54] sm:$0xf]
    %v1174 = vld [vmem:[%s6 + $0x58] sm:$0xf]
    %v1175 = vld [vmem:[%s6 + $0x5c] sm:$0xf]
    %v1176 = vld [vmem:[%s6 + $0x60] sm:$0xf]
    %v1177 = vld [vmem:[%s6 + $0x64] sm:$0xf]
    %v1178 = vld [vmem:[%s6 + $0x68] sm:$0xf]
    %v1179 = vld [vmem:[%s6 + $0x6c] sm:$0xf]
    %v1180 = vld [vmem:[%s6 + $0x70] sm:$0xf]
    %v1181 = vld [vmem:[%s6 + $0x74] sm:$0xf]
    %v1182 = vld [vmem:[%s6 + $0x78] sm:$0xf]
    %v1183 = vld [vmem:[%s6 + $0x7c] sm:$0xf]
    %v1184 = vld [vmem:[%s6 + $0x80] sm:$0xf]
    %v1185 = vld [vmem:[%s6 + $0x84] sm:$0xf]
    %v1186 = vld [vmem:[%s6 + $0x88] sm:$0xf]
    %v1187 = vld [vmem:[%s6 + $0x8c] sm:$0xf]
    %v1188 = vld [vmem:[%s6 + $0x90] sm:$0xf]
    %v1189 = vld [vmem:[%s6 + $0x94] sm:$0x3]
    %v1190 = vpack.c.bf16 %v1108, %v1108
    %v1191 = vpack.c.bf16 %v1109, %v1109
    %v1192 = vpack.c.bf16 %v1110, %v1110
    %v1231 = vunpack.c.l.b16 %v1152
    %v1232 = vunpack.c.l.b16 %v1153
    %v1233 = vunpack.c.l.b16 %v1154
    %v1234 = vunpack.c.l.b16 %v1155
    %v1235 = vunpack.c.l.b16 %v1156
    %v1236 = vunpack.c.l.b16 %v1157
    %v1237 = vunpack.c.l.b16 %v1158
    %v1238 = vunpack.c.l.b16 %v1159
    %v1239 = vunpack.c.l.b16 %v1160
    %v1240 = vunpack.c.l.b16 %v1161
    %v1241 = vunpack.c.l.b16 %v1162
    %v1242 = vunpack.c.l.b16 %v1163
    %v1243 = vunpack.c.l.b16 %v1164
    %v1244 = vunpack.c.l.b16 %v1165
    %v1245 = vunpack.c.l.b16 %v1166
    %v1246 = vunpack.c.l.b16 %v1167
    %v1247 = vunpack.c.l.b16 %v1168
    %v1248 = vunpack.c.l.b16 %v1169
    %v1249 = vunpack.c.l.b16 %v1170
    %v1250 = vunpack.c.l.b16 %v1171
    %v1251 = vunpack.c.l.b16 %v1172
    %v1252 = vunpack.c.l.b16 %v1173
    %v1253 = vunpack.c.l.b16 %v1174
    %v1254 = vunpack.c.l.b16 %v1175
    %v1255 = vunpack.c.l.b16 %v1176
    %v1256 = vunpack.c.l.b16 %v1177
    %v1257 = vunpack.c.l.b16 %v1178
    %v1258 = vunpack.c.l.b16 %v1179
    %v1259 = vunpack.c.l.b16 %v1180
    %v1260 = vunpack.c.l.b16 %v1181
    %v1261 = vunpack.c.l.b16 %v1182
    %v1262 = vunpack.c.l.b16 %v1183
    %v1263 = vunpack.c.l.b16 %v1184
    %v1264 = vunpack.c.l.b16 %v1185
    %v1265 = vunpack.c.l.b16 %v1186
    %v1266 = vunpack.c.l.b16 %v1187
    %v1267 = vunpack.c.l.b16 %v1188
    %v1268 = vunpack.c.l.b16 %v1189
    %v1269 = vpack.c.b16 %v1232, %v1231
    %v1270 = vpack.c.b16 %v1234, %v1233
    %v1271 = vpack.c.b16 %v1236, %v1235
    %v1272 = vpack.c.b16 %v1238, %v1237
    %v1273 = vpack.c.b16 %v1240, %v1239
    %v1274 = vpack.c.b16 %v1242, %v1241
    %v1275 = vpack.c.b16 %v1244, %v1243
    %v1276 = vpack.c.b16 %v1246, %v1245
    %v1277 = vpack.c.b16 %v1248, %v1247
    %v1278 = vpack.c.b16 %v1250, %v1249
    %v1279 = vpack.c.b16 %v1252, %v1251
    %v1280 = vpack.c.b16 %v1254, %v1253
    %v1281 = vpack.c.b16 %v1256, %v1255
    %v1282 = vpack.c.b16 %v1258, %v1257
    %v1283 = vpack.c.b16 %v1260, %v1259
    %v1284 = vpack.c.b16 %v1262, %v1261
    %v1285 = vpack.c.b16 %v1264, %v1263
    %v1286 = vpack.c.b16 %v1266, %v1265
    %v1287 = vpack.c.b16 %v1268, %v1267
    %vm1306 = vcmask 359424
    %v1308 = vsel %vm1306, %v1192, 0
    %vm1310 = vcmask 1045504
    %v1312 = vsel %vm1310, %v1287, 0
    %1314 = vmatprep.subr.bf16.mxu0 0
    %1315 = vmatpush1.bf16.msra.mxu0 %v1276
    %1316 = vmatprep.subr.bf16.mxu0 0
    %1317 = vmatpush1.bf16.msra.mxu0 %v1275
    %1318 = vmatprep.subr.bf16.mxu0 0
    %1319 = vmatpush1.bf16.msra.mxu0 %v1274
    %1320 = vmatprep.subr.bf16.mxu0 0
    %1321 = vmatpush1.bf16.msra.mxu0 %v1273
    %1322 = vmatprep.subr.bf16.mxu0 0
    %1323 = vmatpush1.bf16.msra.mxu0 %v1272
    %1324 = vmatprep.subr.bf16.mxu0 0
    %1325 = vmatpush1.bf16.msra.mxu0 %v1271
    %1326 = vmatprep.subr.bf16.mxu0 0
    %1327 = vmatpush1.bf16.msra.mxu0 %v1270
    %1328 = vmatprep.subr.bf16.mxu0 0
    %1329 = vmatpush1.bf16.msra.mxu0 %v1269
    %1330 = vmatprep.subr.bf16.mxu0 0
    %1331 = vmatpush2.bf16.msra.mxu0 %v1284
    %1332 = vmatprep.subr.bf16.mxu0 0
    %1333 = vmatpush2.bf16.msra.mxu0 %v1283
    %1334 = vmatprep.subr.bf16.mxu0 0
    %1335 = vmatpush2.bf16.msra.mxu0 %v1282
    %1336 = vmatprep.subr.bf16.mxu0 0
    %1337 = vmatpush2.bf16.msra.mxu0 %v1281
    %1338 = vmatprep.subr.bf16.mxu0 0
    %1339 = vmatpush2.bf16.msra.mxu0 %v1280
    %1340 = vmatprep.subr.bf16.mxu0 0
    %1341 = vmatpush2.bf16.msra.mxu0 %v1279
    %1342 = vmatprep.subr.bf16.mxu0 0
    %1343 = vmatpush2.bf16.msra.mxu0 %v1278
    %1344 = vmatprep.subr.bf16.mxu0 0
    %1345 = vmatpush2.bf16.msra.mxu0 %v1277
    %1346 = vmatprep.mubr.bf16.mxu0 %v1191
    %1347 = vmatmul.mubr.bf16.gmra.mxu0 %v1190
    %v1348 = vpop.f32.mrf.mxu0
    %v1349 = vadd.f32 0.0, %v1348
    %v1350 = vpop.f32.mrf.mxu0
    %v1351 = vpop.f32.mrf.mxu0
    %v1352 = vpop.f32.mrf.mxu0
    %1353 = vdwg.mxu0
    %1354 = vmatprep.subr.bf16.mxu0 0
    %1355 = vmatpush1.bf16.msra.mxu0 0
    %1356 = vmatprep.subr.bf16.mxu0 0
    %1357 = vmatpush1.bf16.msra.mxu0 0
    %1358 = vmatprep.subr.bf16.mxu0 0
    %1359 = vmatpush1.bf16.msra.mxu0 0
    %1360 = vmatprep.subr.bf16.mxu0 0
    %1361 = vmatpush1.bf16.msra.mxu0 0
    %1362 = vmatprep.subr.bf16.mxu0 0
    %1363 = vmatpush1.bf16.msra.mxu0 0
    %1364 = vmatprep.subr.bf16.mxu0 0
    %1365 = vmatpush1.bf16.msra.mxu0 %v1312
    %1366 = vmatprep.subr.bf16.mxu0 0
    %1367 = vmatpush1.bf16.msra.mxu0 %v1286
    %1368 = vmatprep.subr.bf16.mxu0 0
    %1369 = vmatpush1.bf16.msra.mxu0 %v1285
    %1370 = vmatprep.subr.bf16.mxu0 0
    %1371 = vmatpush2.bf16.msra.mxu0 0
    %1372 = vmatprep.subr.bf16.mxu0 0
    %1373 = vmatpush2.bf16.msra.mxu0 0
    %1374 = vmatprep.subr.bf16.mxu0 0
    %1375 = vmatpush2.bf16.msra.mxu0 0
    %1376 = vmatprep.subr.bf16.mxu0 0
    %1377 = vmatpush2.bf16.msra.mxu0 0
    %1378 = vmatprep.subr.bf16.mxu0 0
    %1379 = vmatpush2.bf16.msra.mxu0 0
    %1380 = vmatprep.subr.bf16.mxu0 0
    %1381 = vmatpush2.bf16.msra.mxu0 0
    %1382 = vmatprep.subr.bf16.mxu0 0
    %1383 = vmatpush2.bf16.msra.mxu0 0
    %1384 = vmatprep.subr.bf16.mxu0 0
    %1385 = vmatpush2.bf16.msra.mxu0 0
    %1386 = vmatprep.mubr.bf16.mxu0 0
    %1387 = vmatmul.mubr.bf16.gmra.mxu0 %v1308
    %v1388 = vpop.f32.mrf.mxu0
    %v1389 = vadd.f32 %v1349, %v1388
    %v1390 = vpop.f32.mrf.mxu0
    %v1391 = vpop.f32.mrf.mxu0
    %v1392 = vpop.f32.mrf.mxu0
    %1393 = vdwg.mxu0
    %v1432 = vunpack.c.l.b16 %v1111
    %v1433 = vunpack.c.l.b16 %v1112
    %v1434 = vunpack.c.l.b16 %v1113
    %v1435 = vunpack.c.l.b16 %v1114
    %v1436 = vunpack.c.l.b16 %v1115
    %v1437 = vunpack.c.l.b16 %v1116
    %v1438 = vunpack.c.l.b16 %v1117
    %v1439 = vunpack.c.l.b16 %v1118
    %v1440 = vunpack.c.l.b16 %v1119
    %v1441 = vunpack.c.l.b16 %v1120
    %v1442 = vunpack.c.l.b16 %v1121
    %v1443 = vunpack.c.l.b16 %v1122
    %v1444 = vunpack.c.l.b16 %v1123
    %v1445 = vunpack.c.l.b16 %v1124
    %v1446 = vunpack.c.l.b16 %v1125
    %v1447 = vunpack.c.l.b16 %v1126
    %v1448 = vunpack.c.l.b16 %v1127
    %v1449 = vunpack.c.l.b16 %v1128
    %v1450 = vunpack.c.l.b16 %v1129
    %v1451 = vunpack.c.l.b16 %v1130
    %v1452 = vunpack.c.l.b16 %v1131
    %v1453 = vunpack.c.l.b16 %v1132
    %v1454 = vunpack.c.l.b16 %v1133
    %v1455 = vunpack.c.l.b16 %v1134
    %v1456 = vunpack.c.l.b16 %v1135
    %v1457 = vunpack.c.l.b16 %v1136
    %v1458 = vunpack.c.l.b16 %v1137
    %v1459 = vunpack.c.l.b16 %v1138
    %v1460 = vunpack.c.l.b16 %v1139
    %v1461 = vunpack.c.l.b16 %v1140
    %v1462 = vunpack.c.l.b16 %v1141
    %v1463 = vunpack.c.l.b16 %v1142
    %v1464 = vunpack.c.l.b16 %v1143
    %v1465 = vunpack.c.l.b16 %v1144
    %v1466 = vunpack.c.l.b16 %v1145
    %v1467 = vunpack.c.l.b16 %v1146
    %v1468 = vunpack.c.l.b16 %v1147
    %v1469 = vunpack.c.l.b16 %v1148
    %v1470 = vpack.c.b16 %v1433, %v1432
    %v1471 = vpack.c.b16 %v1435, %v1434
    %v1472 = vpack.c.b16 %v1437, %v1436
    %v1473 = vpack.c.b16 %v1439, %v1438
    %v1474 = vpack.c.b16 %v1441, %v1440
    %v1475 = vpack.c.b16 %v1443, %v1442
    %v1476 = vpack.c.b16 %v1445, %v1444
    %v1477 = vpack.c.b16 %v1447, %v1446
    %v1478 = vpack.c.b16 %v1449, %v1448
    %v1479 = vpack.c.b16 %v1451, %v1450
    %v1480 = vpack.c.b16 %v1453, %v1452
    %v1481 = vpack.c.b16 %v1455, %v1454
    %v1482 = vpack.c.b16 %v1457, %v1456
    %v1483 = vpack.c.b16 %v1459, %v1458
    %v1484 = vpack.c.b16 %v1461, %v1460
    %v1485 = vpack.c.b16 %v1463, %v1462
    %v1486 = vpack.c.b16 %v1465, %v1464
    %v1487 = vpack.c.b16 %v1467, %v1466
    %v1488 = vpack.c.b16 %v1469, %v1468
    %v1508 = vsel %vm1306, %v1151, 0
    %v1511 = vsel %vm1310, %v1488, 0
    %1513 = vmatprep.subr.bf16.mxu0 0
    %1514 = vmatpush1.bf16.msra.mxu0 %v1477
    %1515 = vmatprep.subr.bf16.mxu0 0
    %1516 = vmatpush1.bf16.msra.mxu0 %v1476
    %1517 = vmatprep.subr.bf16.mxu0 0
    %1518 = vmatpush1.bf16.msra.mxu0 %v1475
    %1519 = vmatprep.subr.bf16.mxu0 0
    %1520 = vmatpush1.bf16.msra.mxu0 %v1474
    %1521 = vmatprep.subr.bf16.mxu0 0
    %1522 = vmatpush1.bf16.msra.mxu0 %v1473
    %1523 = vmatprep.subr.bf16.mxu0 0
    %1524 = vmatpush1.bf16.msra.mxu0 %v1472
    %1525 = vmatprep.subr.bf16.mxu0 0
    %1526 = vmatpush1.bf16.msra.mxu0 %v1471
    %1527 = vmatprep.subr.bf16.mxu0 0
    %1528 = vmatpush1.bf16.msra.mxu0 %v1470
    %1529 = vmatprep.subr.bf16.mxu0 0
    %1530 = vmatpush2.bf16.msra.mxu0 %v1485
    %1531 = vmatprep.subr.bf16.mxu0 0
    %1532 = vmatpush2.bf16.msra.mxu0 %v1484
    %1533 = vmatprep.subr.bf16.mxu0 0
    %1534 = vmatpush2.bf16.msra.mxu0 %v1483
    %1535 = vmatprep.subr.bf16.mxu0 0
    %1536 = vmatpush2.bf16.msra.mxu0 %v1482
    %1537 = vmatprep.subr.bf16.mxu0 0
    %1538 = vmatpush2.bf16.msra.mxu0 %v1481
    %1539 = vmatprep.subr.bf16.mxu0 0
    %1540 = vmatpush2.bf16.msra.mxu0 %v1480
    %1541 = vmatprep.subr.bf16.mxu0 0
    %1542 = vmatpush2.bf16.msra.mxu0 %v1479
    %1543 = vmatprep.subr.bf16.mxu0 0
    %1544 = vmatpush2.bf16.msra.mxu0 %v1478
    %1545 = vmatprep.mubr.bf16.mxu0 %v1150
    %1546 = vmatmul.mubr.bf16.gmra.mxu0 %v1149
    %v1547 = vpop.f32.mrf.mxu0
    %v1548 = vadd.f32 %v1389, %v1547
    %v1549 = vpop.f32.mrf.mxu0
    %v1550 = vpop.f32.mrf.mxu0
    %v1551 = vpop.f32.mrf.mxu0
    %1552 = vdwg.mxu0
    %1553 = vmatprep.subr.bf16.mxu0 0
    %1554 = vmatpush1.bf16.msra.mxu0 0
    %1555 = vmatprep.subr.bf16.mxu0 0
    %1556 = vmatpush1.bf16.msra.mxu0 0
    %1557 = vmatprep.subr.bf16.mxu0 0
    %1558 = vmatpush1.bf16.msra.mxu0 0
    %1559 = vmatprep.subr.bf16.mxu0 0
    %1560 = vmatpush1.bf16.msra.mxu0 0
    %1561 = vmatprep.subr.bf16.mxu0 0
    %1562 = vmatpush1.bf16.msra.mxu0 0
    %1563 = vmatprep.subr.bf16.mxu0 0
    %1564 = vmatpush1.bf16.msra.mxu0 %v1511
    %1565 = vmatprep.subr.bf16.mxu0 0
    %1566 = vmatpush1.bf16.msra.mxu0 %v1487
    %1567 = vmatprep.subr.bf16.mxu0 0
    %1568 = vmatpush1.bf16.msra.mxu0 %v1486
    %1569 = vmatprep.subr.bf16.mxu0 0
    %1570 = vmatpush2.bf16.msra.mxu0 0
    %1571 = vmatprep.subr.bf16.mxu0 0
    %1572 = vmatpush2.bf16.msra.mxu0 0
    %1573 = vmatprep.subr.bf16.mxu0 0
    %1574 = vmatpush2.bf16.msra.mxu0 0
    %1575 = vmatprep.subr.bf16.mxu0 0
    %1576 = vmatpush2.bf16.msra.mxu0 0
    %1577 = vmatprep.subr.bf16.mxu0 0
    %1578 = vmatpush2.bf16.msra.mxu0 0
    %1579 = vmatprep.subr.bf16.mxu0 0
    %1580 = vmatpush2.bf16.msra.mxu0 0
    %1581 = vmatprep.subr.bf16.mxu0 0
    %1582 = vmatpush2.bf16.msra.mxu0 0
    %1583 = vmatprep.subr.bf16.mxu0 0
    %1584 = vmatpush2.bf16.msra.mxu0 0
    %1585 = vmatprep.mubr.bf16.mxu0 0
    %1586 = vmatmul.mubr.bf16.gmra.mxu0 %v1508
    %v1587 = vpop.f32.mrf.mxu0
    %v1588 = vadd.f32 %v1548, %v1587
    %v1589 = vpop.f32.mrf.mxu0
    %v1590 = vpop.f32.mrf.mxu0
    %v1591 = vpop.f32.mrf.mxu0
    %1592 = vdwg.mxu0
    %v1594 = vlaneseq
    %v1595 = vshrl.u32 %v1594, 7
    %v1596 = vsub.s32 0, %v1595
    %v1597 = vrot.slane %v47, %v1596
    %v1599 = vadd.f32 %v1588, %v1597
    %v1600 = vmax.f32 %v1599, 0.0
    %v1601 = vld [vmem:[%s7] sm:$0xf]
    %v1602 = vld [vmem:[%s7 + $0x4] sm:$0xf]
    %v1603 = vld [vmem:[%s7 + $0x8] sm:$0xf]
    %v1604 = vld [vmem:[%s7 + $0xc] sm:$0xf]
    %v1605 = vpack.c.bf16 %v1600, %v1600
    %v1607 = vlaneseq
    %v1608 = vshrl.u32 %v1607, 7
    %v1609 = vsub.s32 0, %v1608
    %v1610 = vrot.slane %v48, %v1609
    %v1616 = vunpack.c.l.b16 %v1601
    %v1617 = vunpack.c.l.b16 %v1602
    %v1618 = vunpack.c.l.b16 %v1603
    %v1619 = vunpack.c.l.b16 %v1604
    %v1620 = vpack.c.b16 %v1617, %v1616
    %v1621 = vpack.c.b16 %v1619, %v1618
    %vm1624 = vcmask 261120
    %v1626 = vsel %vm1624, %v1605, 0
    %1628 = vmatprep.subr.bf16.mxu0 0
    %1629 = vmatpush1.bf16.msra.mxu0 0
    %1630 = vmatprep.subr.bf16.mxu0 0
    %1631 = vmatpush1.bf16.msra.mxu0 0
    %1632 = vmatprep.subr.bf16.mxu0 0
    %1633 = vmatpush1.bf16.msra.mxu0 0
    %1634 = vmatprep.subr.bf16.mxu0 0
    %1635 = vmatpush1.bf16.msra.mxu0 0
    %1636 = vmatprep.subr.bf16.mxu0 0
    %1637 = vmatpush1.bf16.msra.mxu0 0
    %1638 = vmatprep.subr.bf16.mxu0 0
    %1639 = vmatpush1.bf16.msra.mxu0 0
    %1640 = vmatprep.subr.bf16.mxu0 0
    %1641 = vmatpush1.bf16.msra.mxu0 %v1621
    %1642 = vmatprep.subr.bf16.mxu0 0
    %1643 = vmatpush1.bf16.msra.mxu0 %v1620
    %1644 = vmatprep.subr.bf16.mxu0 0
    %1645 = vmatpush2.bf16.msra.mxu0 0
    %1646 = vmatprep.subr.bf16.mxu0 0
    %1647 = vmatpush2.bf16.msra.mxu0 0
    %1648 = vmatprep.subr.bf16.mxu0 0
    %1649 = vmatpush2.bf16.msra.mxu0 0
    %1650 = vmatprep.subr.bf16.mxu0 0
    %1651 = vmatpush2.bf16.msra.mxu0 0
    %1652 = vmatprep.subr.bf16.mxu0 0
    %1653 = vmatpush2.bf16.msra.mxu0 0
    %1654 = vmatprep.subr.bf16.mxu0 0
    %1655 = vmatpush2.bf16.msra.mxu0 0
    %1656 = vmatprep.subr.bf16.mxu0 0
    %1657 = vmatpush2.bf16.msra.mxu0 0
    %1658 = vmatprep.subr.bf16.mxu0 0
    %1659 = vmatpush2.bf16.msra.mxu0 0
    %1660 = vmatprep.mubr.bf16.mxu0 0
    %1661 = vmatmul.mubr.bf16.gmra.mxu0 %v1626
    %v1662 = vpop.f32.mrf.mxu0
    %v1663 = vadd.f32 %v1610, %v1662
    %v1664 = vpop.f32.mrf.mxu0
    %v1665 = vpop.f32.mrf.mxu0
    %v1666 = vpop.f32.mrf.mxu0
    %1667 = vdwg.mxu0
    %v1668 = vpack.c.bf16 %v1663, %v1663
    %1670 = vrot.lane.b32.xlu0 %v1668, 96
    %v1671 = vpop.permute.xlu0 %1670
    %v1673 = vsel %vm1624, %v1668, 0
    %v1676 = vsel %vm1624, %v1671, 0
    %1678 = vmatprep.subr.bf16.mxu0 0
    %1679 = vmatpush1.bf16.xpose.msra.mxu0 0
    %1680 = vmatprep.subr.bf16.mxu0 0
    %1681 = vmatpush1.bf16.xpose.msra.mxu0 0
    %1682 = vmatprep.subr.bf16.mxu0 0
    %1683 = vmatpush1.bf16.xpose.msra.mxu0 0
    %1684 = vmatprep.subr.bf16.mxu0 0
    %1685 = vmatpush1.bf16.xpose.msra.mxu0 0
    %1686 = vmatprep.subr.bf16.mxu0 0
    %1687 = vmatpush1.bf16.xpose.msra.mxu0 0
    %1688 = vmatprep.subr.bf16.mxu0 0
    %1689 = vmatpush1.bf16.xpose.msra.mxu0 0
    %1690 = vmatprep.subr.bf16.mxu0 0
    %1691 = vmatpush1.bf16.xpose.msra.mxu0 0
    %1692 = vmatprep.subr.bf16.mxu0 0
    %1693 = vmatpush1.bf16.xpose.msra.mxu0 %v1676
    %1694 = vmatprep.subr.bf16.mxu0 0
    %1695 = vmatpush2.bf16.xpose.msra.mxu0 0
    %1696 = vmatprep.subr.bf16.mxu0 0
    %1697 = vmatpush2.bf16.xpose.msra.mxu0 0
    %1698 = vmatprep.subr.bf16.mxu0 0
    %1699 = vmatpush2.bf16.xpose.msra.mxu0 0
    %1700 = vmatprep.subr.bf16.mxu0 0
    %1701 = vmatpush2.bf16.xpose.msra.mxu0 0
    %1702 = vmatprep.subr.bf16.mxu0 0
    %1703 = vmatpush2.bf16.xpose.msra.mxu0 0
    %1704 = vmatprep.subr.bf16.mxu0 0
    %1705 = vmatpush2.bf16.xpose.msra.mxu0 0
    %1706 = vmatprep.subr.bf16.mxu0 0
    %1707 = vmatpush2.bf16.xpose.msra.mxu0 0
    %1708 = vmatprep.subr.bf16.mxu0 0
    %1709 = vmatpush2.bf16.xpose.msra.mxu0 0
    %1710 = vmatprep.mubr.bf16.mxu0 0
    %1711 = vmatmul.mubr.bf16.gmra.mxu0 %v1673
    %v1712 = vpop.f32.mrf.mxu0
    %v1713 = vadd.f32 0.0, %v1712
    %v1714 = vpop.f32.mrf.mxu0
    %v1715 = vpop.f32.mrf.mxu0
    %v1716 = vpop.f32.mrf.mxu0
    %1717 = vdwg.mxu0
    %v1718 = vmul.f32 %v1713, 0.17677669
    %vm1719 = vcmask 64512
    %v1720 = vsel %vm1719, %v1718, -inf
    %1721 = vmax.xlane.f32.xlu0 %v1720
    %v1722 = vpop.xlane.xlu0 %1721
    %v1723 = vsub.f32 %v1718, %v1722
    %v1724 = vmul.f32 %v1723, 1.442695
    %v1725 = vpow.pop %v1724
    %v1726 = vsel %vm1719, %v1725, 0.0
    %1727 = vadd.xlane.f32.xlu0 %v1726
    %v1728 = vpop.xlane.xlu0 %1727
    %v1729 = vrcp.pop %v1728
    %v1730 = vmul.f32 %v1725, %v1729
    %v1731 = vpack.c.bf16 %v1730, %v1730
    %1732 = vrot.lane.b32.xlu0 %v1668, 64
    %v1733 = vpop.permute.xlu0 %1732
    %v1735 = vsel %vm1719, %v1731, 0
    %vm1737 = vcmask 1043456
    %v1739 = vsel %vm1737, %v1733, 0
    %1741 = vmatprep.subr.bf16.mxu0 0
    %1742 = vmatpush1.bf16.msra.mxu0 0
    %1743 = vmatprep.subr.bf16.mxu0 0
    %1744 = vmatpush1.bf16.msra.mxu0 0
    %1745 = vmatprep.subr.bf16.mxu0 0
    %1746 = vmatpush1.bf16.msra.mxu0 0
    %1747 = vmatprep.subr.bf16.mxu0 0
    %1748 = vmatpush1.bf16.msra.mxu0 0
    %1749 = vmatprep.subr.bf16.mxu0 0
    %1750 = vmatpush1.bf16.msra.mxu0 0
    %1751 = vmatprep.subr.bf16.mxu0 0
    %1752 = vmatpush1.bf16.msra.mxu0 0
    %1753 = vmatprep.subr.bf16.mxu0 0
    %1754 = vmatpush1.bf16.msra.mxu0 0
    %1755 = vmatprep.subr.bf16.mxu0 0
    %1756 = vmatpush1.bf16.msra.mxu0 %v1739
    %1757 = vmatprep.subr.bf16.mxu0 0
    %1758 = vmatpush2.bf16.msra.mxu0 0
    %1759 = vmatprep.subr.bf16.mxu0 0
    %1760 = vmatpush2.bf16.msra.mxu0 0
    %1761 = vmatprep.subr.bf16.mxu0 0
    %1762 = vmatpush2.bf16.msra.mxu0 0
    %1763 = vmatprep.subr.bf16.mxu0 0
    %1764 = vmatpush2.bf16.msra.mxu0 0
    %1765 = vmatprep.subr.bf16.mxu0 0
    %1766 = vmatpush2.bf16.msra.mxu0 0
    %1767 = vmatprep.subr.bf16.mxu0 0
    %1768 = vmatpush2.bf16.msra.mxu0 0
    %1769 = vmatprep.subr.bf16.mxu0 0
    %1770 = vmatpush2.bf16.msra.mxu0 0
    %1771 = vmatprep.subr.bf16.mxu0 0
    %1772 = vmatpush2.bf16.msra.mxu0 0
    %1773 = vmatprep.mubr.bf16.mxu0 0
    %1774 = vmatmul.mubr.bf16.gmra.mxu0 %v1735
    %v1775 = vpop.f32.mrf.mxu0
    %v1776 = vadd.f32 0.0, %v1775
    %v1777 = vpop.f32.mrf.mxu0
    %v1778 = vpop.f32.mrf.mxu0
    %v1779 = vpop.f32.mrf.mxu0
    %1780 = vdwg.mxu0
    %v1781 = vld [vmem:[%s8] sm:$0xf]
    %v1782 = vld [vmem:[%s8 + $0x4] sm:$0xf]
    %v1783 = vld [vmem:[%s8 + $0x8] sm:$0xf]
    %v1784 = vld [vmem:[%s8 + $0xc] sm:$0xf]
    %v1785 = vpack.c.bf16 %v1776, %v1776
    %v1787 = vlaneseq
    %v1788 = vshrl.u32 %v1787, 7
    %v1789 = vsub.s32 0, %v1788
    %v1790 = vrot.slane %v49, %v1789
    %v1796 = vunpack.c.l.b16 %v1781
    %v1797 = vunpack.c.l.b16 %v1782
    %v1798 = vunpack.c.l.b16 %v1783
    %v1799 = vunpack.c.l.b16 %v1784
    %v1800 = vpack.c.b16 %v1797, %v1796
    %v1801 = vpack.c.b16 %v1799, %v1798
    %v1805 = vsel %vm1624, %v1785, 0
    %1807 = vmatprep.subr.bf16.mxu0 0
    %1808 = vmatpush1.bf16.msra.mxu0 0
    %1809 = vmatprep.subr.bf16.mxu0 0
    %1810 = vmatpush1.bf16.msra.mxu0 0
    %1811 = vmatprep.subr.bf16.mxu0 0
    %1812 = vmatpush1.bf16.msra.mxu0 0
    %1813 = vmatprep.subr.bf16.mxu0 0
    %1814 = vmatpush1.bf16.msra.mxu0 0
    %1815 = vmatprep.subr.bf16.mxu0 0
    %1816 = vmatpush1.bf16.msra.mxu0 0
    %1817 = vmatprep.subr.bf16.mxu0 0
    %1818 = vmatpush1.bf16.msra.mxu0 0
    %1819 = vmatprep.subr.bf16.mxu0 0
    %1820 = vmatpush1.bf16.msra.mxu0 %v1801
    %1821 = vmatprep.subr.bf16.mxu0 0
    %1822 = vmatpush1.bf16.msra.mxu0 %v1800
    %1823 = vmatprep.subr.bf16.mxu0 0
    %1824 = vmatpush2.bf16.msra.mxu0 0
    %1825 = vmatprep.subr.bf16.mxu0 0
    %1826 = vmatpush2.bf16.msra.mxu0 0
    %1827 = vmatprep.subr.bf16.mxu0 0
    %1828 = vmatpush2.bf16.msra.mxu0 0
    %1829 = vmatprep.subr.bf16.mxu0 0
    %1830 = vmatpush2.bf16.msra.mxu0 0
    %1831 = vmatprep.subr.bf16.mxu0 0
    %1832 = vmatpush2.bf16.msra.mxu0 0
    %1833 = vmatprep.subr.bf16.mxu0 0
    %1834 = vmatpush2.bf16.msra.mxu0 0
    %1835 = vmatprep.subr.bf16.mxu0 0
    %1836 = vmatpush2.bf16.msra.mxu0 0
    %1837 = vmatprep.subr.bf16.mxu0 0
    %1838 = vmatpush2.bf16.msra.mxu0 0
    %1839 = vmatprep.mubr.bf16.mxu0 0
    %1840 = vmatmul.mubr.bf16.gmra.mxu0 %v1805
    %v1841 = vpop.f32.mrf.mxu0
    %v1842 = vadd.f32 %v1790, %v1841
    %v1843 = vpop.f32.mrf.mxu0
    %v1844 = vpop.f32.mrf.mxu0
    %v1845 = vpop.f32.mrf.mxu0
    %1846 = vdwg.mxu0
    %v1847 = vadd.f32 %v1600, %v1842
    %v1848 = vsel %vm1624, %v1847, 0.0
    %1849 = vadd.xlane.f32.xlu0 %v1848
    %v1850 = vpop.xlane.xlu0 %1849
    %v1851 = vrcp.pop 32.0
    %v1852 = vmul.f32 %v1850, %v1851
    %v1853 = vsub.f32 %v1847, %v1852
    %v1854 = vmul.f32 %v1853, %v1853
    %v1855 = vsel %vm1624, %v1854, 0.0
    %1856 = vadd.xlane.f32.xlu0 %v1855
    %v1857 = vpop.xlane.xlu0 %1856
    %v1858 = vmul.f32 %v1857, %v1851
    %v1859 = vadd.f32 %v1858, 1e-05
    %v1860 = vrsqrt.pop %v1859
    %v1861 = vmul.f32 %v1853, %v1860
    %v1863 = vlaneseq
    %v1864 = vshrl.u32 %v1863, 7
    %v1865 = vsub.s32 0, %v1864
    %v1866 = vrot.slane %v50, %v1865
    %v1868 = vmul.f32 %v1861, %v1866
    %v1870 = vlaneseq
    %v1871 = vshrl.u32 %v1870, 7
    %v1872 = vsub.s32 0, %v1871
    %v1873 = vrot.slane %v51, %v1872
    %v1875 = vadd.f32 %v1868, %v1873
    %v1876 = vld [vmem:[%s9] sm:$0xff]
    %v1877 = vld [vmem:[%s9 + $0x8] sm:$0xff]
    %v1878 = vld [vmem:[%s9 + $0x10] sm:$0xff]
    %v1879 = vld [vmem:[%s9 + $0x18] sm:$0xff]
    %v1880 = vpack.c.bf16 %v1875, %v1875
    %v1882 = vlaneseq
    %v1883 = vshrl.u32 %v1882, 7
    %v1884 = vsub.s32 0, %v1883
    %v1885 = vrot.slane %v52, %v1884
    %v1886 = vlaneseq
    %v1887 = vshrl.u32 %v1886, 7
    %v1888 = vsub.s32 1, %v1887
    %v1889 = vrot.slane %v52, %v1888
    %v1896 = vunpack.c.l.b16 %v1876
    %v1897 = vunpack.c.h.b16 %v1876
    %v1898 = vunpack.c.l.b16 %v1877
    %v1899 = vunpack.c.h.b16 %v1877
    %v1900 = vunpack.c.l.b16 %v1878
    %v1901 = vunpack.c.h.b16 %v1878
    %v1902 = vunpack.c.l.b16 %v1879
    %v1903 = vunpack.c.h.b16 %v1879
    %v1904 = vpack.c.b16 %v1898, %v1896
    %v1905 = vpack.c.b16 %v1899, %v1897
    %v1906 = vpack.c.b16 %v1902, %v1900
    %v1907 = vpack.c.b16 %v1903, %v1901
    %v1913 = vsel %vm1624, %v1880, 0
    %1915 = vmatprep.subr.bf16.mxu0 0
    %1916 = vmatpush1.bf16.msra.mxu0 0
    %1917 = vmatprep.subr.bf16.mxu0 0
    %1918 = vmatpush1.bf16.msra.mxu0 0
    %1919 = vmatprep.subr.bf16.mxu0 0
    %1920 = vmatpush1.bf16.msra.mxu0 0
    %1921 = vmatprep.subr.bf16.mxu0 0
    %1922 = vmatpush1.bf16.msra.mxu0 0
    %1923 = vmatprep.subr.bf16.mxu0 0
    %1924 = vmatpush1.bf16.msra.mxu0 0
    %1925 = vmatprep.subr.bf16.mxu0 0
    %1926 = vmatpush1.bf16.msra.mxu0 0
    %1927 = vmatprep.subr.bf16.mxu0 %v1907
    %1928 = vmatpush1.bf16.msra.mxu0 %v1906
    %1929 = vmatprep.subr.bf16.mxu0 %v1905
    %1930 = vmatpush1.bf16.msra.mxu0 %v1904
    %1931 = vmatprep.subr.bf16.mxu0 0
    %1932 = vmatpush2.bf16.msra.mxu0 0
    %1933 = vmatprep.subr.bf16.mxu0 0
    %1934 = vmatpush2.bf16.msra.mxu0 0
    %1935 = vmatprep.subr.bf16.mxu0 0
    %1936 = vmatpush2.bf16.msra.mxu0 0
    %1937 = vmatprep.subr.bf16.mxu0 0
    %1938 = vmatpush2.bf16.msra.mxu0 0
    %1939 = vmatprep.subr.bf16.mxu0 0
    %1940 = vmatpush2.bf16.msra.mxu0 0
    %1941 = vmatprep.subr.bf16.mxu0 0
    %1942 = vmatpush2.bf16.msra.mxu0 0
    %1943 = vmatprep.subr.bf16.mxu0 0
    %1944 = vmatpush2.bf16.msra.mxu0 0
    %1945 = vmatprep.subr.bf16.mxu0 0
    %1946 = vmatpush2.bf16.msra.mxu0 0
    %1947 = vmatprep.mubr.bf16.mxu0 0
    %1948 = vmatmul.mubr.bf16.gmra.mxu0 %v1913
    %v1949 = vpop.f32.mrf.mxu0
    %v1950 = vadd.f32 %v1885, %v1949
    %v1951 = vpop.f32.mrf.mxu0
    %v1952 = vadd.f32 %v1889, %v1951
    %v1953 = vpop.f32.mrf.mxu0
    %v1954 = vpop.f32.mrf.mxu0
    %1955 = vdwg.mxu0
    %v1956 = vmax.f32 %v1950, 0.0
    %v1957 = vmax.f32 %v1952, 0.0
    %v1958 = vld [vmem:[%s10] sm:$0xf]
    %v1959 = vld [vmem:[%s10 + $0x4] sm:$0xf]
    %v1960 = vld [vmem:[%s10 + $0x8] sm:$0xf]
    %v1961 = vld [vmem:[%s10 + $0xc] sm:$0xf]
    %v1962 = vld [vmem:[%s10 + $0x10] sm:$0xf]
    %v1963 = vld [vmem:[%s10 + $0x14] sm:$0xf]
    %v1964 = vld [vmem:[%s10 + $0x18] sm:$0xf]
    %v1965 = vld [vmem:[%s10 + $0x1c] sm:$0xf]
    %v1966 = vld [vmem:[%s10 + $0x20] sm:$0xf]
    %v1967 = vld [vmem:[%s10 + $0x24] sm:$0xf]
    %v1968 = vld [vmem:[%s10 + $0x28] sm:$0xf]
    %v1969 = vld [vmem:[%s10 + $0x2c] sm:$0xf]
    %v1970 = vld [vmem:[%s10 + $0x30] sm:$0xf]
    %v1971 = vld [vmem:[%s10 + $0x34] sm:$0xf]
    %v1972 = vld [vmem:[%s10 + $0x38] sm:$0xf]
    %v1973 = vld [vmem:[%s10 + $0x3c] sm:$0xf]
    %v1974 = vld [vmem:[%s10 + $0x40] sm:$0xf]
    %v1975 = vld [vmem:[%s10 + $0x44] sm:$0xf]
    %v1976 = vld [vmem:[%s10 + $0x48] sm:$0xf]
    %v1977 = vld [vmem:[%s10 + $0x4c] sm:$0xf]
    %v1978 = vld [vmem:[%s10 + $0x50] sm:$0xf]
    %v1979 = vld [vmem:[%s10 + $0x54] sm:$0xf]
    %v1980 = vld [vmem:[%s10 + $0x58] sm:$0xf]
    %v1981 = vld [vmem:[%s10 + $0x5c] sm:$0xf]
    %v1982 = vld [vmem:[%s10 + $0x60] sm:$0xf]
    %v1983 = vld [vmem:[%s10 + $0x64] sm:$0xf]
    %v1984 = vld [vmem:[%s10 + $0x68] sm:$0xf]
    %v1985 = vld [vmem:[%s10 + $0x6c] sm:$0xf]
    %v1986 = vld [vmem:[%s10 + $0x70] sm:$0xf]
    %v1987 = vld [vmem:[%s10 + $0x74] sm:$0xf]
    %v1988 = vld [vmem:[%s10 + $0x78] sm:$0xf]
    %v1989 = vld [vmem:[%s10 + $0x7c] sm:$0xf]
    %v1990 = vpack.c.bf16 %v1956, %v1956
    %v1991 = vpack.c.bf16 %v1957, %v1957
    %v1993 = vlaneseq
    %v1994 = vshrl.u32 %v1993, 7
    %v1995 = vsub.s32 0, %v1994
    %v1996 = vrot.slane %v53, %v1995
    %v2030 = vunpack.c.l.b16 %v1958
    %v2031 = vunpack.c.l.b16 %v1959
    %v2032 = vunpack.c.l.b16 %v1960
    %v2033 = vunpack.c.l.b16 %v1961
    %v2034 = vunpack.c.l.b16 %v1962
    %v2035 = vunpack.c.l.b16 %v1963
    %v2036 = vunpack.c.l.b16 %v1964
    %v2037 = vunpack.c.l.b16 %v1965
    %v2038 = vunpack.c.l.b16 %v1966
    %v2039 = vunpack.c.l.b16 %v1967
    %v2040 = vunpack.c.l.b16 %v1968
    %v2041 = vunpack.c.l.b16 %v1969
    %v2042 = vunpack.c.l.b16 %v1970
    %v2043 = vunpack.c.l.b16 %v1971
    %v2044 = vunpack.c.l.b16 %v1972
    %v2045 = vunpack.c.l.b16 %v1973
    %v2046 = vunpack.c.l.b16 %v1974
    %v2047 = vunpack.c.l.b16 %v1975
    %v2048 = vunpack.c.l.b16 %v1976
    %v2049 = vunpack.c.l.b16 %v1977
    %v2050 = vunpack.c.l.b16 %v1978
    %v2051 = vunpack.c.l.b16 %v1979
    %v2052 = vunpack.c.l.b16 %v1980
    %v2053 = vunpack.c.l.b16 %v1981
    %v2054 = vunpack.c.l.b16 %v1982
    %v2055 = vunpack.c.l.b16 %v1983
    %v2056 = vunpack.c.l.b16 %v1984
    %v2057 = vunpack.c.l.b16 %v1985
    %v2058 = vunpack.c.l.b16 %v1986
    %v2059 = vunpack.c.l.b16 %v1987
    %v2060 = vunpack.c.l.b16 %v1988
    %v2061 = vunpack.c.l.b16 %v1989
    %v2062 = vpack.c.b16 %v2031, %v2030
    %v2063 = vpack.c.b16 %v2033, %v2032
    %v2064 = vpack.c.b16 %v2035, %v2034
    %v2065 = vpack.c.b16 %v2037, %v2036
    %v2066 = vpack.c.b16 %v2039, %v2038
    %v2067 = vpack.c.b16 %v2041, %v2040
    %v2068 = vpack.c.b16 %v2043, %v2042
    %v2069 = vpack.c.b16 %v2045, %v2044
    %v2070 = vpack.c.b16 %v2047, %v2046
    %v2071 = vpack.c.b16 %v2049, %v2048
    %v2072 = vpack.c.b16 %v2051, %v2050
    %v2073 = vpack.c.b16 %v2053, %v2052
    %v2074 = vpack.c.b16 %v2055, %v2054
    %v2075 = vpack.c.b16 %v2057, %v2056
    %v2076 = vpack.c.b16 %v2059, %v2058
    %v2077 = vpack.c.b16 %v2061, %v2060
    %2094 = vmatprep.subr.bf16.mxu0 0
    %2095 = vmatpush1.bf16.msra.mxu0 %v2069
    %2096 = vmatprep.subr.bf16.mxu0 0
    %2097 = vmatpush1.bf16.msra.mxu0 %v2068
    %2098 = vmatprep.subr.bf16.mxu0 0
    %2099 = vmatpush1.bf16.msra.mxu0 %v2067
    %2100 = vmatprep.subr.bf16.mxu0 0
    %2101 = vmatpush1.bf16.msra.mxu0 %v2066
    %2102 = vmatprep.subr.bf16.mxu0 0
    %2103 = vmatpush1.bf16.msra.mxu0 %v2065
    %2104 = vmatprep.subr.bf16.mxu0 0
    %2105 = vmatpush1.bf16.msra.mxu0 %v2064
    %2106 = vmatprep.subr.bf16.mxu0 0
    %2107 = vmatpush1.bf16.msra.mxu0 %v2063
    %2108 = vmatprep.subr.bf16.mxu0 0
    %2109 = vmatpush1.bf16.msra.mxu0 %v2062
    %2110 = vmatprep.subr.bf16.mxu0 0
    %2111 = vmatpush2.bf16.msra.mxu0 %v2077
    %2112 = vmatprep.subr.bf16.mxu0 0
    %2113 = vmatpush2.bf16.msra.mxu0 %v2076
    %2114 = vmatprep.subr.bf16.mxu0 0
    %2115 = vmatpush2.bf16.msra.mxu0 %v2075
    %2116 = vmatprep.subr.bf16.mxu0 0
    %2117 = vmatpush2.bf16.msra.mxu0 %v2074
    %2118 = vmatprep.subr.bf16.mxu0 0
    %2119 = vmatpush2.bf16.msra.mxu0 %v2073
    %2120 = vmatprep.subr.bf16.mxu0 0
    %2121 = vmatpush2.bf16.msra.mxu0 %v2072
    %2122 = vmatprep.subr.bf16.mxu0 0
    %2123 = vmatpush2.bf16.msra.mxu0 %v2071
    %2124 = vmatprep.subr.bf16.mxu0 0
    %2125 = vmatpush2.bf16.msra.mxu0 %v2070
    %2126 = vmatprep.mubr.bf16.mxu0 %v1991
    %2127 = vmatmul.mubr.bf16.gmra.mxu0 %v1990
    %v2128 = vpop.f32.mrf.mxu0
    %v2129 = vadd.f32 %v1996, %v2128
    %v2130 = vpop.f32.mrf.mxu0
    %v2131 = vpop.f32.mrf.mxu0
    %v2132 = vpop.f32.mrf.mxu0
    %2133 = vdwg.mxu0
    %v2134 = vadd.f32 %v1875, %v2129
    %v2135 = vsel %vm1624, %v2134, 0.0
    %2136 = vadd.xlane.f32.xlu0 %v2135
    %v2137 = vpop.xlane.xlu0 %2136
    %v2138 = vmul.f32 %v2137, %v1851
    %v2139 = vsub.f32 %v2134, %v2138
    %v2140 = vmul.f32 %v2139, %v2139
    %v2141 = vsel %vm1624, %v2140, 0.0
    %2142 = vadd.xlane.f32.xlu0 %v2141
    %v2143 = vpop.xlane.xlu0 %2142
    %v2144 = vmul.f32 %v2143, %v1851
    %v2145 = vadd.f32 %v2144, 1e-05
    %v2146 = vrsqrt.pop %v2145
    %v2147 = vmul.f32 %v2139, %v2146
    %v2149 = vlaneseq
    %v2150 = vshrl.u32 %v2149, 7
    %v2151 = vsub.s32 0, %v2150
    %v2152 = vrot.slane %v54, %v2151
    %v2154 = vmul.f32 %v2147, %v2152
    %v2156 = vlaneseq
    %v2157 = vshrl.u32 %v2156, 7
    %v2158 = vsub.s32 0, %v2157
    %v2159 = vrot.slane %v55, %v2158
    %v2161 = vadd.f32 %v2154, %v2159
    %v2162 = vld [vmem:[%s11] sm:$0xf]
    %v2163 = vld [vmem:[%s11 + $0x4] sm:$0xf]
    %v2164 = vld [vmem:[%s11 + $0x8] sm:$0xf]
    %v2165 = vld [vmem:[%s11 + $0xc] sm:$0xf]
    %v2166 = vpack.c.bf16 %v2161, %v2161
    %v2168 = vlaneseq
    %v2169 = vshrl.u32 %v2168, 7
    %v2170 = vsub.s32 0, %v2169
    %v2171 = vrot.slane %v56, %v2170
    %v2177 = vunpack.c.l.b16 %v2162
    %v2178 = vunpack.c.l.b16 %v2163
    %v2179 = vunpack.c.l.b16 %v2164
    %v2180 = vunpack.c.l.b16 %v2165
    %v2181 = vpack.c.b16 %v2178, %v2177
    %v2182 = vpack.c.b16 %v2180, %v2179
    %v2186 = vsel %vm1624, %v2166, 0
    %2188 = vmatprep.subr.bf16.mxu0 0
    %2189 = vmatpush1.bf16.msra.mxu0 0
    %2190 = vmatprep.subr.bf16.mxu0 0
    %2191 = vmatpush1.bf16.msra.mxu0 0
    %2192 = vmatprep.subr.bf16.mxu0 0
    %2193 = vmatpush1.bf16.msra.mxu0 0
    %2194 = vmatprep.subr.bf16.mxu0 0
    %2195 = vmatpush1.bf16.msra.mxu0 0
    %2196 = vmatprep.subr.bf16.mxu0 0
    %2197 = vmatpush1.bf16.msra.mxu0 0
    %2198 = vmatprep.subr.bf16.mxu0 0
    %2199 = vmatpush1.bf16.msra.mxu0 0
    %2200 = vmatprep.subr.bf16.mxu0 0
    %2201 = vmatpush1.bf16.msra.mxu0 %v2182
    %2202 = vmatprep.subr.bf16.mxu0 0
    %2203 = vmatpush1.bf16.msra.mxu0 %v2181
    %2204 = vmatprep.subr.bf16.mxu0 0
    %2205 = vmatpush2.bf16.msra.mxu0 0
    %2206 = vmatprep.subr.bf16.mxu0 0
    %2207 = vmatpush2.bf16.msra.mxu0 0
    %2208 = vmatprep.subr.bf16.mxu0 0
    %2209 = vmatpush2.bf16.msra.mxu0 0
    %2210 = vmatprep.subr.bf16.mxu0 0
    %2211 = vmatpush2.bf16.msra.mxu0 0
    %2212 = vmatprep.subr.bf16.mxu0 0
    %2213 = vmatpush2.bf16.msra.mxu0 0
    %2214 = vmatprep.subr.bf16.mxu0 0
    %2215 = vmatpush2.bf16.msra.mxu0 0
    %2216 = vmatprep.subr.bf16.mxu0 0
    %2217 = vmatpush2.bf16.msra.mxu0 0
    %2218 = vmatprep.subr.bf16.mxu0 0
    %2219 = vmatpush2.bf16.msra.mxu0 0
    %2220 = vmatprep.mubr.bf16.mxu0 0
    %2221 = vmatmul.mubr.bf16.gmra.mxu0 %v2186
    %v2222 = vpop.f32.mrf.mxu0
    %v2223 = vadd.f32 %v2171, %v2222
    %v2224 = vpop.f32.mrf.mxu0
    %v2225 = vpop.f32.mrf.mxu0
    %v2226 = vpop.f32.mrf.mxu0
    %2227 = vdwg.mxu0
    %v2228 = vxor.u32 %v2223, 2147483648
    %v2229 = vmul.f32 %v2228, 1.442695
    %v2230 = vpow.pop %v2229
    %v2231 = vadd.f32 %v2230, 1.0
    %v2232 = vrcp.pop %v2231
    %v2233 = vmul.f32 1.0, %v2232
    %vm2234 = vcmask 39936
    %2235 = vst.msk [vmem:[#allocation2] sm:$0xff] %vm2234, %v2233
    // Predicated region
    $region54: #{tpu_custom_call.1} parent=1 // pred_check
      _
    $region55: #{tpu_custom_call.1} parent=1 // pred_check_branch
      %2237 = sbr.rel (0) target = $region57
    $region56: #{tpu_custom_call.1} parent=1 // pred_region
      %s2239 = ssub.s32 128, 128
      %2240 = vsyncadd [#allocation3], %s2239
      %s2242 = sshll.u32 [#allocation2], 4
      %s2243 = int_to_ptr.vmem [resolvable:$true] %s2242
      %2245 = dma.vmem_to_hbm [thread:$0]  %s2243, 128, %s13, [#allocation3]
    $region57: #{tpu_custom_call.1} parent=1 // pred_fallthru
      _
    // Predicated region
    $region58: #{tpu_custom_call.1} parent=1 // pred_check
      _
    $region59: #{tpu_custom_call.1} parent=1 // pred_check_branch
      %2247 = sbr.rel (0) target = $region61
    $region60: #{tpu_custom_call.1} parent=1 // pred_region
      %2248 = dma.done [#allocation3], 128
    $region61: #{tpu_custom_call.1} parent=1 // pred_fallthru
      _
    %2249 = vsyncpa [#allocation3], 1

</llo_original>
